<compile_context>
chip_gen: v5e
topology: v5e:2x2
jax: 0.10.0
libtpu: 0.0.40
codegen_flags: <defaults>
</compile_context>

<pallas_src>
import functools
import math

import jax
import jax.numpy as jnp
from jax import lax
from jax.experimental import pallas as pl
from jax.experimental.pallas import tpu as pltpu

EPS = 1e-5


def _layernorm(x, gamma, beta):
    mu = jnp.mean(x, axis=-1, keepdims=True)
    var = jnp.mean((x - mu) * (x - mu), axis=-1, keepdims=True)
    return (x - mu) * lax.rsqrt(var + EPS) * gamma + beta


def _encoder_stack_kernel(x_ref, wq_ref, wk_ref, wv_ref, wo_ref, w1_ref, w2_ref,
                          bqkv_ref, vd_ref, vff_ref, o_ref, act_ref,
                          *, num_heads, seq_len):
    """One grid step = (batch block, layer).  Fuses per-head QKV projection,
    attention, per-head output-projection accumulation, residual+LN1, FFN(relu),
    residual+LN2; the (Bt*S, D) activation is carried across layers in VMEM."""
    layer = pl.program_id(1)

    # Layer 0: pull this batch block's input into the VMEM activation carry.
    @pl.when(layer == 0)
    def _():
        act_ref[...] = x_ref[...].astype(jnp.float32)

    x = act_ref[...]                              # (Bt*S, D) float32
    rows, D = x.shape
    S = seq_len
    Bt = rows // S
    H = num_heads
    hd = D // H

    vd = vd_ref[0]                                # (6, D): bo, g1, be1, b2, g2, be2
    bo, g1, be1 = vd[0:1], vd[1:2], vd[2:3]
    b2, g2, be2 = vd[3:4], vd[4:5], vd[5:6]
    b1 = vff_ref[0]                               # (1, FF)
    bqkv = bqkv_ref[0]                            # (3*H, hd); bq rows pre-scaled

    xb = x.astype(jnp.bfloat16)

    # --- multi-head attention.  Per-head weight slabs come straight from the
    # input refs (no lane slicing); the output projection is accumulated
    # head-by-head against wo[h] so no (S, D) attention slab is needed. ---
    proj = jnp.zeros((rows, D), jnp.float32)
    for h in range(H):
        # Q/K/V projections over all Bt*S rows at once (M = Bt*S, K = D).
        q = jnp.dot(xb, wq_ref[0, h], preferred_element_type=jnp.float32) + bqkv[h:h + 1]
        k = jnp.dot(xb, wk_ref[0, h], preferred_element_type=jnp.float32) + bqkv[H + h:H + h + 1]
        v = jnp.dot(xb, wv_ref[0, h], preferred_element_type=jnp.float32) + bqkv[2 * H + h:2 * H + h + 1]
        # Attention never mixes batch elements: loop the Bt row blocks.
        ctx_parts = []
        for b in range(Bt):
            r0 = b * S
            qh = q[r0:r0 + S].astype(jnp.bfloat16)
            kh = k[r0:r0 + S].astype(jnp.bfloat16)
            vh = v[r0:r0 + S].astype(jnp.bfloat16)
            # scores = qh @ kh^T (contract head dim of both; scale already folded).
            s = lax.dot_general(qh, kh, (((1,), (1,)), ((), ())),
                                preferred_element_type=jnp.float32)
            s = s - jnp.max(s, axis=-1, keepdims=True)
            p = jnp.exp(s)
            # softmax denominator on the EUP instead of a VALU divide.
            p = p * pl.reciprocal(jnp.sum(p, axis=-1, keepdims=True), approx=True)
            ctx_parts.append(jnp.dot(p.astype(jnp.bfloat16), vh,
                                     preferred_element_type=jnp.float32))
        ctx = ctx_parts[0] if Bt == 1 else jnp.concatenate(ctx_parts, axis=0)
        proj = proj + jnp.dot(ctx.astype(jnp.bfloat16), wo_ref[0, h],
                              preferred_element_type=jnp.float32)
    # TODO(synk): for S >= ~1k, flash-tile the KV axis (online softmax) so the
    # (S, S) scores never materialize; for many heads on 256-wide MXUs, batch
    # the score/PV matmuls over heads with a single dot_general batch dim.

    # --- residual + LayerNorm1 ---
    x1n = _layernorm(x + proj + bo, g1, be1)

    # --- FFN (relu) + residual + LayerNorm2 ---
    hid = jnp.dot(x1n.astype(jnp.bfloat16), w1_ref[0],
                  preferred_element_type=jnp.float32) + b1
    hid = jnp.maximum(hid, 0.0)
    ffn = jnp.dot(hid.astype(jnp.bfloat16), w2_ref[0],
                  preferred_element_type=jnp.float32) + b2
    out = _layernorm(x1n + ffn, g2, be2)

    act_ref[...] = out                            # f32 carry to next layer
    o_ref[0] = out.astype(o_ref.dtype)            # this layer's output


def _choose_batch_block(B, S):
    """Batch elements per grid step.  Larger Bt amortizes the per-layer weight
    DMA over more rows (and raises matmul M); bounded so the f32 activation
    carry / scores stay small, and the row block stays 8-aligned."""
    candidates = []
    for d in range(1, B + 1):
        if B % d:
            continue
        rows = d * S
        if (rows % 8 == 0 or d == B) and d <= 8 and rows <= 512:
            candidates.append(d)
    if not candidates:
        return B                                   # full-extent block is always legal
    best = max(candidates)
    # If one step swallows the whole batch, split in two so both of v7x's
    # TensorCores get a "parallel" block (no effect on 1-TC v5e/v6e).
    if best == B and B % 2 == 0 and ((B // 2) * S) % 8 == 0:
        best = B // 2
    return best


def transformer_encoder_forward(x, layer_params_list, num_heads, norm_params=None,
                                batch_block=None):
    """Mirrors _TransformerEncoder.forward: returns outputs[1:], i.e. one tensor
    per layer (the input itself is dropped).  The whole layer stack runs in a
    single fused pallas_call."""
    B, S, D = x.shape
    L = len(layer_params_list)
    FF = layer_params_list[0]["w1"].shape[1]
    assert D % num_heads == 0
    hd = D // num_heads
    scale = 1.0 / math.sqrt(hd)

    Bt = batch_block if batch_block is not None else _choose_batch_block(B, S)
    assert B % Bt == 0
    assert (Bt * S) % 8 == 0 or Bt == B, "row block must be 8-aligned"
    nb = B // Bt
    rows = Bt * S

    stack = lambda fn: jnp.stack([fn(p) for p in layer_params_list], axis=0)
    bf16 = jnp.bfloat16

    def split_in(w):                 # (D, D) -> (H, D, hd): per-head input proj
        return w.reshape(D, num_heads, hd).transpose(1, 0, 2)

    # 1/sqrt(hd) folded into wq / bq on the host.
    wq = stack(lambda p: split_in(p["wqkv"][:, :D] * scale)).astype(bf16)      # (L,H,D,hd)
    wk = stack(lambda p: split_in(p["wqkv"][:, D:2 * D])).astype(bf16)         # (L,H,D,hd)
    wv = stack(lambda p: split_in(p["wqkv"][:, 2 * D:])).astype(bf16)          # (L,H,D,hd)
    wo = stack(lambda p: p["wo"].reshape(num_heads, hd, D)).astype(bf16)       # (L,H,hd,D)
    w1 = stack(lambda p: p["w1"]).astype(bf16)                                 # (L,D,FF)
    w2 = stack(lambda p: p["w2"]).astype(bf16)                                 # (L,FF,D)

    def pack_bqkv(p):                # per-head Q/K/V biases, scale folded into bq
        b = p["bqkv"][0]
        return jnp.concatenate([(b[:D] * scale).reshape(num_heads, hd),
                                b[D:2 * D].reshape(num_heads, hd),
                                b[2 * D:].reshape(num_heads, hd)], axis=0)
    bqkv = stack(pack_bqkv).astype(jnp.float32)                                # (L,3H,hd)

    vecs_d = stack(lambda p: jnp.concatenate(
        [p["bo"], p["gamma1"], p["beta1"], p["b2"], p["gamma2"], p["beta2"]],
        axis=0)).astype(jnp.float32)                                           # (L,6,D)
    vec_ff = stack(lambda p: p["b1"]).astype(jnp.float32)                      # (L,1,FF)

    x_flat = x.reshape(B * S, D)

    def wspec(shape):
        pad = (0,) * (len(shape) - 1)
        return pl.BlockSpec(shape, lambda b, l, _p=pad: (l,) + _p)

    in_specs = [
        pl.BlockSpec((rows, D), lambda b, l: (b, 0)),      # x (resident across l)
        wspec((1, num_heads, D, hd)),                      # wq (per-head)
        wspec((1, num_heads, D, hd)),                      # wk
        wspec((1, num_heads, D, hd)),                      # wv
        wspec((1, num_heads, hd, D)),                      # wo (per-head rows)
        wspec((1, D, FF)), wspec((1, FF, D)),              # w1, w2
        wspec((1, 3 * num_heads, hd)),                     # per-head qkv biases
        wspec((1, 6, D)), wspec((1, 1, FF)),               # bias / LN vectors
    ]
    out_spec = pl.BlockSpec((1, rows, D), lambda b, l: (l, b, 0))

    # Scoped-VMEM budget: double-buffered bf16 weight blocks + activation
    # blocks/carry + the major in-kernel intermediates, capped per generation
    # (v7x: 64 MiB physical VMEM; v5e/v6e: 128 MiB).
    est = int(
        2 * 2 * (4 * D * D + 2 * D * FF)                  # bf16 weights, 2 buffers
        + 2 * 4 * (9 * D + 2 * FF)                        # bias/LN vector blocks
        + 2 * 2 * 4 * rows * D                            # x / out blocks, 2 buffers
        + 4 * rows * D                                    # f32 activation carry
        + 4 * rows * (4 * D + 2 * FF)                     # proj/x1n/ffn/out + hidden
        + 4 * rows * 3 * hd + 6 * S * S                   # per-head q/k/v + scores
        + (2 << 20))                                      # headroom
    try:
        phys_vmem = int(getattr(pltpu.get_tpu_info(), "vmem_capacity_bytes",
                                64 * 1024 * 1024))
    except Exception:
        phys_vmem = 64 * 1024 * 1024
    cap = max(int(phys_vmem * 0.8), 32 * 1024 * 1024)
    vmem_limit = int(min(max(est, 32 * 1024 * 1024), cap))
    # TODO(synk): if `est` ever exceeds `cap` (huge D/FF/S on v7x's 64 MiB VMEM),
    # stream w1/w2 in FF-chunks (memory_space=pl.ANY + pltpu.emit_pipeline)
    # instead of relying on this clamp.

    kernel = functools.partial(_encoder_stack_kernel,
                               num_heads=num_heads, seq_len=S)
    out_flat = pl.pallas_call(
        kernel,
        out_shape=jax.ShapeDtypeStruct((L, B * S, D), x.dtype),
        grid_spec=pltpu.PrefetchScalarGridSpec(
            num_scalar_prefetch=0,
            grid=(nb, L),                          # layer axis last (carried)
            in_specs=in_specs,
            out_specs=out_spec,
            scratch_shapes=[pltpu.VMEM((rows, D), jnp.float32)],   # activation carry
        ),
        compiler_params=pltpu.CompilerParams(
            dimension_semantics=("parallel", "arbitrary"),
            vmem_limit_bytes=vmem_limit,
        ),
    )(x_flat, wq, wk, wv, wo, w1, w2, bqkv, vecs_d, vec_ff)

    out_stacked = out_flat.reshape(L, B, S, D)
    outputs = [out_stacked[i] for i in range(L)]
    if norm_params is not None:                    # norm=None in this module config
        g, b = norm_params
        outputs[-1] = _layernorm(outputs[-1], g, b)
    return outputs


# TODO(synk): `mask` / `src_key_padding_mask` are None in this configuration; a
# nonzero mask would add a bias term to the attention scores inside the kernel.


# ----------------------- pure-JAX reference (for checking) -----------------------
def _layer_ref(x, p, num_heads):
    B, S, D = x.shape
    hd = D // num_heads
    qkv = x @ p["wqkv"] + p["bqkv"][0]
    q, k, v = qkv[..., :D], qkv[..., D:2 * D], qkv[..., 2 * D:]

    def split(t):  # (B, S, D) -> (B, H, S, hd)
        return t.reshape(B, S, num_heads, hd).transpose(0, 2, 1, 3)

    qh, kh, vh = split(q) * (hd ** -0.5), split(k), split(v)
    s = jnp.einsum("bhqd,bhkd->bhqk", qh, kh)
    patt = jax.nn.softmax(s, axis=-1)
    o = jnp.einsum("bhqk,bhkd->bhqd", patt, vh).transpose(0, 2, 1, 3).reshape(B, S, D)
    o = o @ p["wo"] + p["bo"][0]
    x1 = x + o

    def ln(t, g, b):
        mu = jnp.mean(t, -1, keepdims=True)
        var = jnp.mean((t - mu) ** 2, -1, keepdims=True)
        return (t - mu) / jnp.sqrt(var + EPS) * g[0] + b[0]

    x1n = ln(x1, p["gamma1"], p["beta1"])
    f = jnp.maximum(x1n @ p["w1"] + p["b1"][0], 0.0) @ p["w2"] + p["b2"][0]
    return ln(x1n + f, p["gamma2"], p["beta2"])


def _make_layer_params(key, D, FF):
    ks = jax.random.split(key, 8)
    s = 0.02
    return {
        "wqkv": jax.random.normal(ks[0], (D, 3 * D), jnp.float32) * s,
        "bqkv": jax.random.normal(ks[1], (1, 3 * D), jnp.float32) * s,
        "wo": jax.random.normal(ks[2], (D, D), jnp.float32) * s,
        "bo": jax.random.normal(ks[3], (1, D), jnp.float32) * s,
        "gamma1": jnp.ones((1, D), jnp.float32),
        "beta1": jnp.zeros((1, D), jnp.float32),
        "w1": jax.random.normal(ks[4], (D, FF), jnp.float32) * s,
        "b1": jax.random.normal(ks[5], (1, FF), jnp.float32) * s,
        "w2": jax.random.normal(ks[6], (FF, D), jnp.float32) * s,
        "b2": jax.random.normal(ks[7], (1, D), jnp.float32) * s,
        "gamma2": jnp.ones((1, D), jnp.float32),
        "beta2": jnp.zeros((1, D), jnp.float32),
    }


def _round_matmul_weights_to_bf16(p):
    q = dict(p)
    for name in ("wqkv", "wo", "w1", "w2"):
        q[name] = p[name].astype(jnp.bfloat16).astype(jnp.float32)
    return q


if __name__ == "__main__":
    B, S, D, H, FF, L = 4, 8, 32, 4, 64, 2   # small, consistent with the module
    key = jax.random.PRNGKey(0)
    kx, *kl = jax.random.split(key, L + 1)
    x = jax.random.normal(kx, (B, S, D), jnp.float32)     # layout: (B, S, D)
    layer_params = [_make_layer_params(k, D, FF) for k in kl]

    outs = transformer_encoder_forward(x, layer_params, H, norm_params=None)
    outs = [jax.block_until_ready(o) for o in outs]
    assert len(outs) == L
    assert outs[-1].shape == (B, S, D)

    # Reference: f32 math with matmul weights rounded to bf16 (matching the
    # kernel's operand precision); tolerance covers bf16 activation rounding
    # and the approximate EUP reciprocal in the softmax.
    ref_params = [_round_matmul_weights_to_bf16(p) for p in layer_params]
    ref, refs = x, []
    for p in ref_params:
        ref = _layer_ref(ref, p, H)
        refs.append(ref)
    for o, r in zip(outs, refs):
        assert jnp.allclose(o, r, rtol=2e-2, atol=2e-2), \
            float(jnp.max(jnp.abs(o - r)))

    print("KERNEL_OK")
</pallas_src>

<mosaic_0001>
module attributes {stable_mosaic.version = 11 : i64} {
  func.func @_encoder_stack_kernel(%arg0: i32, %arg1: i32, %arg2: memref<16x32xf32, #tpu.memory_space<vmem>>, %arg3: memref<1x4x32x8xbf16, #tpu.memory_space<vmem>>, %arg4: memref<1x4x32x8xbf16, #tpu.memory_space<vmem>>, %arg5: memref<1x4x32x8xbf16, #tpu.memory_space<vmem>>, %arg6: memref<1x4x8x32xbf16, #tpu.memory_space<vmem>>, %arg7: memref<1x32x64xbf16, #tpu.memory_space<vmem>>, %arg8: memref<1x64x32xbf16, #tpu.memory_space<vmem>>, %arg9: memref<1x12x8xf32, #tpu.memory_space<vmem>>, %arg10: memref<1x6x32xf32, #tpu.memory_space<vmem>>, %arg11: memref<1x1x64xf32, #tpu.memory_space<vmem>>, %arg12: memref<1x16x32xf32, #tpu.memory_space<vmem>>, %arg13: memref<16x32xf32, #tpu.memory_space<vmem>>) attributes {dimension_semantics = [#tpu.dimension_semantics<parallel>, #tpu.dimension_semantics<arbitrary>], iteration_bounds = array<i64: 2, 2>, scalar_prefetch = 0 : i64, scratch_operands = 1 : i64, tpu.core_type = #tpu.core_type<tc>, window_params = [{transform_indices = @transform_0, window_bounds = array<i64: 16, 32>}, {transform_indices = @transform_1, window_bounds = array<i64: 1, 4, 32, 8>}, {transform_indices = @transform_2, window_bounds = array<i64: 1, 4, 32, 8>}, {transform_indices = @transform_3, window_bounds = array<i64: 1, 4, 32, 8>}, {transform_indices = @transform_4, window_bounds = array<i64: 1, 4, 8, 32>}, {transform_indices = @transform_5, window_bounds = array<i64: 1, 32, 64>}, {transform_indices = @transform_6, window_bounds = array<i64: 1, 64, 32>}, {transform_indices = @transform_7, window_bounds = array<i64: 1, 12, 8>}, {transform_indices = @transform_8, window_bounds = array<i64: 1, 6, 32>}, {transform_indices = @transform_9, window_bounds = array<i64: 1, 1, 64>}, {transform_indices = @transform_10, window_bounds = array<i64: 1, 16, 32>}]} {
    %c0_i32 = arith.constant 0 : i32
    %0 = arith.cmpi eq, %arg1, %c0_i32 : i32
    %1 = arith.extui %0 : i1 to i32
    %c0_i32_0 = arith.constant 0 : i32
    %2 = arith.cmpi ne, %1, %c0_i32_0 : i32
    scf.if %2 {
      %c0_144 = arith.constant 0 : index
      %c0_145 = arith.constant 0 : index
      %336 = vector.load %arg2[%c0_144, %c0_145] : memref<16x32xf32, #tpu.memory_space<vmem>>, vector<16x32xf32>
      %c0_146 = arith.constant 0 : index
      %c0_147 = arith.constant 0 : index
      %337 = vector.load %arg13[%c0_146, %c0_147] : memref<16x32xf32, #tpu.memory_space<vmem>>, vector<16x32xf32>
      tpu.vector_store %arg13[%c0_146, %c0_147], %336 {strides = array<i32>} : memref<16x32xf32, #tpu.memory_space<vmem>>, vector<16x32xf32>,
    } else {
    }
    %c0 = arith.constant 0 : index
    %c0_1 = arith.constant 0 : index
    %3 = vector.load %arg13[%c0, %c0_1] : memref<16x32xf32, #tpu.memory_space<vmem>>, vector<16x32xf32>
    %c0_2 = arith.constant 0 : index
    %c0_3 = arith.constant 0 : index
    %c0_4 = arith.constant 0 : index
    %4 = vector.load %arg10[%c0_2, %c0_3, %c0_4] : memref<1x6x32xf32, #tpu.memory_space<vmem>>, vector<1x6x32xf32>
    %5 = vector.shape_cast %4 : vector<1x6x32xf32> to vector<6x32xf32>
    %6 = vector.extract_strided_slice %5 {offsets = [0, 0], sizes = [1, 32], strides = [1, 1]} : vector<6x32xf32> to vector<1x32xf32>
    %7 = vector.extract_strided_slice %5 {offsets = [1, 0], sizes = [1, 32], strides = [1, 1]} : vector<6x32xf32> to vector<1x32xf32>
    %8 = vector.extract_strided_slice %5 {offsets = [2, 0], sizes = [1, 32], strides = [1, 1]} : vector<6x32xf32> to vector<1x32xf32>
    %9 = vector.extract_strided_slice %5 {offsets = [3, 0], sizes = [1, 32], strides = [1, 1]} : vector<6x32xf32> to vector<1x32xf32>
    %10 = vector.extract_strided_slice %5 {offsets = [4, 0], sizes = [1, 32], strides = [1, 1]} : vector<6x32xf32> to vector<1x32xf32>
    %11 = vector.extract_strided_slice %5 {offsets = [5, 0], sizes = [1, 32], strides = [1, 1]} : vector<6x32xf32> to vector<1x32xf32>
    %c0_5 = arith.constant 0 : index
    %c0_6 = arith.constant 0 : index
    %c0_7 = arith.constant 0 : index
    %12 = vector.load %arg11[%c0_5, %c0_6, %c0_7] : memref<1x1x64xf32, #tpu.memory_space<vmem>>, vector<1x1x64xf32>
    %13 = vector.shape_cast %12 : vector<1x1x64xf32> to vector<1x64xf32>
    %c0_8 = arith.constant 0 : index
    %c0_9 = arith.constant 0 : index
    %c0_10 = arith.constant 0 : index
    %14 = vector.load %arg9[%c0_8, %c0_9, %c0_10] : memref<1x12x8xf32, #tpu.memory_space<vmem>>, vector<1x12x8xf32>
    %15 = vector.shape_cast %14 : vector<1x12x8xf32> to vector<12x8xf32>
    %16 = arith.truncf %3 : vector<16x32xf32> to vector<16x32xbf16>
    %cst = arith.constant 0.000000e+00 : f32
    %17 = vector.broadcast %cst : f32 to vector<16x32xf32>
    %c0_11 = arith.constant 0 : index
    %c0_12 = arith.constant 0 : index
    %c0_13 = arith.constant 0 : index
    %c0_14 = arith.constant 0 : index
    %18 = vector.load %arg3[%c0_11, %c0_12, %c0_13, %c0_14] : memref<1x4x32x8xbf16, #tpu.memory_space<vmem>>, vector<1x1x32x8xbf16>
    %19 = vector.shape_cast %18 : vector<1x1x32x8xbf16> to vector<32x8xbf16>
    %cst_15 = arith.constant dense<0.000000e+00> : vector<16x8xf32>
    %20 = tpu.matmul %16, %19, %cst_15 {dimension_numbers = #tpu.dot_dimension_numbers<[1], [0], [0], [1], [0, 0, 1, 1], [], []>} : vector<16x32xbf16>, vector<32x8xbf16>, vector<16x8xf32> -> vector<16x8xf32>
    %21 = vector.extract_strided_slice %15 {offsets = [0, 0], sizes = [1, 8], strides = [1, 1]} : vector<12x8xf32> to vector<1x8xf32>
    %22 = vector.broadcast %21 : vector<1x8xf32> to vector<16x8xf32>
    %23 = arith.addf %20, %22 : vector<16x8xf32>
    %c0_16 = arith.constant 0 : index
    %c0_17 = arith.constant 0 : index
    %c0_18 = arith.constant 0 : index
    %c0_19 = arith.constant 0 : index
    %24 = vector.load %arg4[%c0_16, %c0_17, %c0_18, %c0_19] : memref<1x4x32x8xbf16, #tpu.memory_space<vmem>>, vector<1x1x32x8xbf16>
    %25 = vector.shape_cast %24 : vector<1x1x32x8xbf16> to vector<32x8xbf16>
    %cst_20 = arith.constant dense<0.000000e+00> : vector<16x8xf32>
    %26 = tpu.matmul %16, %25, %cst_20 {dimension_numbers = #tpu.dot_dimension_numbers<[1], [0], [0], [1], [0, 0, 1, 1], [], []>} : vector<16x32xbf16>, vector<32x8xbf16>, vector<16x8xf32> -> vector<16x8xf32>
    %27 = vector.extract_strided_slice %15 {offsets = [4, 0], sizes = [1, 8], strides = [1, 1]} : vector<12x8xf32> to vector<1x8xf32>
    %28 = vector.broadcast %27 : vector<1x8xf32> to vector<16x8xf32>
    %29 = arith.addf %26, %28 : vector<16x8xf32>
    %c0_21 = arith.constant 0 : index
    %c0_22 = arith.constant 0 : index
    %c0_23 = arith.constant 0 : index
    %c0_24 = arith.constant 0 : index
    %30 = vector.load %arg5[%c0_21, %c0_22, %c0_23, %c0_24] : memref<1x4x32x8xbf16, #tpu.memory_space<vmem>>, vector<1x1x32x8xbf16>
    %31 = vector.shape_cast %30 : vector<1x1x32x8xbf16> to vector<32x8xbf16>
    %cst_25 = arith.constant dense<0.000000e+00> : vector<16x8xf32>
    %32 = tpu.matmul %16, %31, %cst_25 {dimension_numbers = #tpu.dot_dimension_numbers<[1], [0], [0], [1], [0, 0, 1, 1], [], []>} : vector<16x32xbf16>, vector<32x8xbf16>, vector<16x8xf32> -> vector<16x8xf32>
    %33 = vector.extract_strided_slice %15 {offsets = [8, 0], sizes = [1, 8], strides = [1, 1]} : vector<12x8xf32> to vector<1x8xf32>
    %34 = vector.broadcast %33 : vector<1x8xf32> to vector<16x8xf32>
    %35 = arith.addf %32, %34 : vector<16x8xf32>
    %36 = vector.extract_strided_slice %23 {offsets = [0, 0], sizes = [8, 8], strides = [1, 1]} : vector<16x8xf32> to vector<8x8xf32>
    %37 = arith.truncf %36 : vector<8x8xf32> to vector<8x8xbf16>
    %38 = vector.extract_strided_slice %29 {offsets = [0, 0], sizes = [8, 8], strides = [1, 1]} : vector<16x8xf32> to vector<8x8xf32>
    %39 = arith.truncf %38 : vector<8x8xf32> to vector<8x8xbf16>
    %40 = vector.extract_strided_slice %35 {offsets = [0, 0], sizes = [8, 8], strides = [1, 1]} : vector<16x8xf32> to vector<8x8xf32>
    %41 = arith.truncf %40 : vector<8x8xf32> to vector<8x8xbf16>
    %cst_26 = arith.constant dense<0.000000e+00> : vector<8x8xf32>
    %42 = tpu.matmul %37, %39, %cst_26 {dimension_numbers = #tpu.dot_dimension_numbers<[1], [1], [0], [0], [0, 0, 1, 0], [], []>} : vector<8x8xbf16>, vector<8x8xbf16>, vector<8x8xf32> -> vector<8x8xf32>
    %cst_27 = arith.constant dense<0xFF800000> : vector<8xf32>
    %43 = vector.multi_reduction <maximumf>, %42, %cst_27 [1] : vector<8x8xf32> to vector<8xf32>
    %44 = vector.shape_cast %43 : vector<8xf32> to vector<8x1xf32>
    %45 = vector.broadcast %44 : vector<8x1xf32> to vector<8x8xf32>
    %46 = arith.subf %42, %45 : vector<8x8xf32>
    %47 = math.exp %46 : vector<8x8xf32>
    %cst_28 = arith.constant dense<0.000000e+00> : vector<8xf32>
    %48 = vector.multi_reduction <add>, %47, %cst_28 [1] : vector<8x8xf32> to vector<8xf32>
    %49 = vector.shape_cast %48 : vector<8xf32> to vector<8x1xf32>
    %50 = tpu.reciprocal %49 {approx = true} : vector<8x1xf32> -> vector<8x1xf32>
    %51 = vector.broadcast %50 : vector<8x1xf32> to vector<8x8xf32>
    %52 = arith.mulf %47, %51 : vector<8x8xf32>
    %53 = arith.truncf %52 : vector<8x8xf32> to vector<8x8xbf16>
    %cst_29 = arith.constant dense<0.000000e+00> : vector<8x8xf32>
    %54 = tpu.matmul %53, %41, %cst_29 {dimension_numbers = #tpu.dot_dimension_numbers<[1], [0], [0], [1], [0, 0, 1, 1], [], []>} : vector<8x8xbf16>, vector<8x8xbf16>, vector<8x8xf32> -> vector<8x8xf32>
    %55 = vector.extract_strided_slice %23 {offsets = [8, 0], sizes = [8, 8], strides = [1, 1]} : vector<16x8xf32> to vector<8x8xf32>
    %56 = arith.truncf %55 : vector<8x8xf32> to vector<8x8xbf16>
    %57 = vector.extract_strided_slice %29 {offsets = [8, 0], sizes = [8, 8], strides = [1, 1]} : vector<16x8xf32> to vector<8x8xf32>
    %58 = arith.truncf %57 : vector<8x8xf32> to vector<8x8xbf16>
    %59 = vector.extract_strided_slice %35 {offsets = [8, 0], sizes = [8, 8], strides = [1, 1]} : vector<16x8xf32> to vector<8x8xf32>
    %60 = arith.truncf %59 : vector<8x8xf32> to vector<8x8xbf16>
    %cst_30 = arith.constant dense<0.000000e+00> : vector<8x8xf32>
    %61 = tpu.matmul %56, %58, %cst_30 {dimension_numbers = #tpu.dot_dimension_numbers<[1], [1], [0], [0], [0, 0, 1, 0], [], []>} : vector<8x8xbf16>, vector<8x8xbf16>, vector<8x8xf32> -> vector<8x8xf32>
    %cst_31 = arith.constant dense<0xFF800000> : vector<8xf32>
    %62 = vector.multi_reduction <maximumf>, %61, %cst_31 [1] : vector<8x8xf32> to vector<8xf32>
    %63 = vector.shape_cast %62 : vector<8xf32> to vector<8x1xf32>
    %64 = vector.broadcast %63 : vector<8x1xf32> to vector<8x8xf32>
    %65 = arith.subf %61, %64 : vector<8x8xf32>
    %66 = math.exp %65 : vector<8x8xf32>
    %cst_32 = arith.constant dense<0.000000e+00> : vector<8xf32>
    %67 = vector.multi_reduction <add>, %66, %cst_32 [1] : vector<8x8xf32> to vector<8xf32>
    %68 = vector.shape_cast %67 : vector<8xf32> to vector<8x1xf32>
    %69 = tpu.reciprocal %68 {approx = true} : vector<8x1xf32> -> vector<8x1xf32>
    %70 = vector.broadcast %69 : vector<8x1xf32> to vector<8x8xf32>
    %71 = arith.mulf %66, %70 : vector<8x8xf32>
    %72 = arith.truncf %71 : vector<8x8xf32> to vector<8x8xbf16>
    %cst_33 = arith.constant dense<0.000000e+00> : vector<8x8xf32>
    %73 = tpu.matmul %72, %60, %cst_33 {dimension_numbers = #tpu.dot_dimension_numbers<[1], [0], [0], [1], [0, 0, 1, 1], [], []>} : vector<8x8xbf16>, vector<8x8xbf16>, vector<8x8xf32> -> vector<8x8xf32>
    %74 = tpu.concatenate %54, %73 in 0 : vector<8x8xf32>, vector<8x8xf32> -> vector<16x8xf32>
    %75 = arith.truncf %74 : vector<16x8xf32> to vector<16x8xbf16>
    %c0_34 = arith.constant 0 : index
    %c0_35 = arith.constant 0 : index
    %c0_36 = arith.constant 0 : index
    %c0_37 = arith.constant 0 : index
    %76 = vector.load %arg6[%c0_34, %c0_35, %c0_36, %c0_37] : memref<1x4x8x32xbf16, #tpu.memory_space<vmem>>, vector<1x1x8x32xbf16>
    %77 = vector.shape_cast %76 : vector<1x1x8x32xbf16> to vector<8x32xbf16>
    %cst_38 = arith.constant dense<0.000000e+00> : vector<16x32xf32>
    %78 = tpu.matmul %75, %77, %cst_38 {dimension_numbers = #tpu.dot_dimension_numbers<[1], [0], [0], [1], [0, 0, 1, 1], [], []>} : vector<16x8xbf16>, vector<8x32xbf16>, vector<16x32xf32> -> vector<16x32xf32>
    %79 = arith.addf %17, %78 : vector<16x32xf32>
    %c0_39 = arith.constant 0 : index
    %c1 = arith.constant 1 : index
    %c0_40 = arith.constant 0 : index
    %c0_41 = arith.constant 0 : index
    %80 = vector.load %arg3[%c0_39, %c1, %c0_40, %c0_41] : memref<1x4x32x8xbf16, #tpu.memory_space<vmem>>, vector<1x1x32x8xbf16>
    %81 = vector.shape_cast %80 : vector<1x1x32x8xbf16> to vector<32x8xbf16>
    %cst_42 = arith.constant dense<0.000000e+00> : vector<16x8xf32>
    %82 = tpu.matmul %16, %81, %cst_42 {dimension_numbers = #tpu.dot_dimension_numbers<[1], [0], [0], [1], [0, 0, 1, 1], [], []>} : vector<16x32xbf16>, vector<32x8xbf16>, vector<16x8xf32> -> vector<16x8xf32>
    %83 = vector.extract_strided_slice %15 {offsets = [1, 0], sizes = [1, 8], strides = [1, 1]} : vector<12x8xf32> to vector<1x8xf32>
    %84 = vector.broadcast %83 : vector<1x8xf32> to vector<16x8xf32>
    %85 = arith.addf %82, %84 : vector<16x8xf32>
    %c0_43 = arith.constant 0 : index
    %c1_44 = arith.constant 1 : index
    %c0_45 = arith.constant 0 : index
    %c0_46 = arith.constant 0 : index
    %86 = vector.load %arg4[%c0_43, %c1_44, %c0_45, %c0_46] : memref<1x4x32x8xbf16, #tpu.memory_space<vmem>>, vector<1x1x32x8xbf16>
    %87 = vector.shape_cast %86 : vector<1x1x32x8xbf16> to vector<32x8xbf16>
    %cst_47 = arith.constant dense<0.000000e+00> : vector<16x8xf32>
    %88 = tpu.matmul %16, %87, %cst_47 {dimension_numbers = #tpu.dot_dimension_numbers<[1], [0], [0], [1], [0, 0, 1, 1], [], []>} : vector<16x32xbf16>, vector<32x8xbf16>, vector<16x8xf32> -> vector<16x8xf32>
    %89 = vector.extract_strided_slice %15 {offsets = [5, 0], sizes = [1, 8], strides = [1, 1]} : vector<12x8xf32> to vector<1x8xf32>
    %90 = vector.broadcast %89 : vector<1x8xf32> to vector<16x8xf32>
    %91 = arith.addf %88, %90 : vector<16x8xf32>
    %c0_48 = arith.constant 0 : index
    %c1_49 = arith.constant 1 : index
    %c0_50 = arith.constant 0 : index
    %c0_51 = arith.constant 0 : index
    %92 = vector.load %arg5[%c0_48, %c1_49, %c0_50, %c0_51] : memref<1x4x32x8xbf16, #tpu.memory_space<vmem>>, vector<1x1x32x8xbf16>
    %93 = vector.shape_cast %92 : vector<1x1x32x8xbf16> to vector<32x8xbf16>
    %cst_52 = arith.constant dense<0.000000e+00> : vector<16x8xf32>
    %94 = tpu.matmul %16, %93, %cst_52 {dimension_numbers = #tpu.dot_dimension_numbers<[1], [0], [0], [1], [0, 0, 1, 1], [], []>} : vector<16x32xbf16>, vector<32x8xbf16>, vector<16x8xf32> -> vector<16x8xf32>
    %95 = vector.extract_strided_slice %15 {offsets = [9, 0], sizes = [1, 8], strides = [1, 1]} : vector<12x8xf32> to vector<1x8xf32>
    %96 = vector.broadcast %95 : vector<1x8xf32> to vector<16x8xf32>
    %97 = arith.addf %94, %96 : vector<16x8xf32>
    %98 = vector.extract_strided_slice %85 {offsets = [0, 0], sizes = [8, 8], strides = [1, 1]} : vector<16x8xf32> to vector<8x8xf32>
    %99 = arith.truncf %98 : vector<8x8xf32> to vector<8x8xbf16>
    %100 = vector.extract_strided_slice %91 {offsets = [0, 0], sizes = [8, 8], strides = [1, 1]} : vector<16x8xf32> to vector<8x8xf32>
    %101 = arith.truncf %100 : vector<8x8xf32> to vector<8x8xbf16>
    %102 = vector.extract_strided_slice %97 {offsets = [0, 0], sizes = [8, 8], strides = [1, 1]} : vector<16x8xf32> to vector<8x8xf32>
    %103 = arith.truncf %102 : vector<8x8xf32> to vector<8x8xbf16>
    %cst_53 = arith.constant dense<0.000000e+00> : vector<8x8xf32>
    %104 = tpu.matmul %99, %101, %cst_53 {dimension_numbers = #tpu.dot_dimension_numbers<[1], [1], [0], [0], [0, 0, 1, 0], [], []>} : vector<8x8xbf16>, vector<8x8xbf16>, vector<8x8xf32> -> vector<8x8xf32>
    %cst_54 = arith.constant dense<0xFF800000> : vector<8xf32>
    %105 = vector.multi_reduction <maximumf>, %104, %cst_54 [1] : vector<8x8xf32> to vector<8xf32>
    %106 = vector.shape_cast %105 : vector<8xf32> to vector<8x1xf32>
    %107 = vector.broadcast %106 : vector<8x1xf32> to vector<8x8xf32>
    %108 = arith.subf %104, %107 : vector<8x8xf32>
    %109 = math.exp %108 : vector<8x8xf32>
    %cst_55 = arith.constant dense<0.000000e+00> : vector<8xf32>
    %110 = vector.multi_reduction <add>, %109, %cst_55 [1] : vector<8x8xf32> to vector<8xf32>
    %111 = vector.shape_cast %110 : vector<8xf32> to vector<8x1xf32>
    %112 = tpu.reciprocal %111 {approx = true} : vector<8x1xf32> -> vector<8x1xf32>
    %113 = vector.broadcast %112 : vector<8x1xf32> to vector<8x8xf32>
    %114 = arith.mulf %109, %113 : vector<8x8xf32>
    %115 = arith.truncf %114 : vector<8x8xf32> to vector<8x8xbf16>
    %cst_56 = arith.constant dense<0.000000e+00> : vector<8x8xf32>
    %116 = tpu.matmul %115, %103, %cst_56 {dimension_numbers = #tpu.dot_dimension_numbers<[1], [0], [0], [1], [0, 0, 1, 1], [], []>} : vector<8x8xbf16>, vector<8x8xbf16>, vector<8x8xf32> -> vector<8x8xf32>
    %117 = vector.extract_strided_slice %85 {offsets = [8, 0], sizes = [8, 8], strides = [1, 1]} : vector<16x8xf32> to vector<8x8xf32>
    %118 = arith.truncf %117 : vector<8x8xf32> to vector<8x8xbf16>
    %119 = vector.extract_strided_slice %91 {offsets = [8, 0], sizes = [8, 8], strides = [1, 1]} : vector<16x8xf32> to vector<8x8xf32>
    %120 = arith.truncf %119 : vector<8x8xf32> to vector<8x8xbf16>
    %121 = vector.extract_strided_slice %97 {offsets = [8, 0], sizes = [8, 8], strides = [1, 1]} : vector<16x8xf32> to vector<8x8xf32>
    %122 = arith.truncf %121 : vector<8x8xf32> to vector<8x8xbf16>
    %cst_57 = arith.constant dense<0.000000e+00> : vector<8x8xf32>
    %123 = tpu.matmul %118, %120, %cst_57 {dimension_numbers = #tpu.dot_dimension_numbers<[1], [1], [0], [0], [0, 0, 1, 0], [], []>} : vector<8x8xbf16>, vector<8x8xbf16>, vector<8x8xf32> -> vector<8x8xf32>
    %cst_58 = arith.constant dense<0xFF800000> : vector<8xf32>
    %124 = vector.multi_reduction <maximumf>, %123, %cst_58 [1] : vector<8x8xf32> to vector<8xf32>
    %125 = vector.shape_cast %124 : vector<8xf32> to vector<8x1xf32>
    %126 = vector.broadcast %125 : vector<8x1xf32> to vector<8x8xf32>
    %127 = arith.subf %123, %126 : vector<8x8xf32>
    %128 = math.exp %127 : vector<8x8xf32>
    %cst_59 = arith.constant dense<0.000000e+00> : vector<8xf32>
    %129 = vector.multi_reduction <add>, %128, %cst_59 [1] : vector<8x8xf32> to vector<8xf32>
    %130 = vector.shape_cast %129 : vector<8xf32> to vector<8x1xf32>
    %131 = tpu.reciprocal %130 {approx = true} : vector<8x1xf32> -> vector<8x1xf32>
    %132 = vector.broadcast %131 : vector<8x1xf32> to vector<8x8xf32>
    %133 = arith.mulf %128, %132 : vector<8x8xf32>
    %134 = arith.truncf %133 : vector<8x8xf32> to vector<8x8xbf16>
    %cst_60 = arith.constant dense<0.000000e+00> : vector<8x8xf32>
    %135 = tpu.matmul %134, %122, %cst_60 {dimension_numbers = #tpu.dot_dimension_numbers<[1], [0], [0], [1], [0, 0, 1, 1], [], []>} : vector<8x8xbf16>, vector<8x8xbf16>, vector<8x8xf32> -> vector<8x8xf32>
    %136 = tpu.concatenate %116, %135 in 0 : vector<8x8xf32>, vector<8x8xf32> -> vector<16x8xf32>
    %137 = arith.truncf %136 : vector<16x8xf32> to vector<16x8xbf16>
    %c0_61 = arith.constant 0 : index
    %c1_62 = arith.constant 1 : index
    %c0_63 = arith.constant 0 : index
    %c0_64 = arith.constant 0 : index
    %138 = vector.load %arg6[%c0_61, %c1_62, %c0_63, %c0_64] : memref<1x4x8x32xbf16, #tpu.memory_space<vmem>>, vector<1x1x8x32xbf16>
    %139 = vector.shape_cast %138 : vector<1x1x8x32xbf16> to vector<8x32xbf16>
    %cst_65 = arith.constant dense<0.000000e+00> : vector<16x32xf32>
    %140 = tpu.matmul %137, %139, %cst_65 {dimension_numbers = #tpu.dot_dimension_numbers<[1], [0], [0], [1], [0, 0, 1, 1], [], []>} : vector<16x8xbf16>, vector<8x32xbf16>, vector<16x32xf32> -> vector<16x32xf32>
    %141 = arith.addf %79, %140 : vector<16x32xf32>
    %c0_66 = arith.constant 0 : index
    %c2 = arith.constant 2 : index
    %c0_67 = arith.constant 0 : index
    %c0_68 = arith.constant 0 : index
    %142 = vector.load %arg3[%c0_66, %c2, %c0_67, %c0_68] : memref<1x4x32x8xbf16, #tpu.memory_space<vmem>>, vector<1x1x32x8xbf16>
    %143 = vector.shape_cast %142 : vector<1x1x32x8xbf16> to vector<32x8xbf16>
    %cst_69 = arith.constant dense<0.000000e+00> : vector<16x8xf32>
    %144 = tpu.matmul %16, %143, %cst_69 {dimension_numbers = #tpu.dot_dimension_numbers<[1], [0], [0], [1], [0, 0, 1, 1], [], []>} : vector<16x32xbf16>, vector<32x8xbf16>, vector<16x8xf32> -> vector<16x8xf32>
    %145 = vector.extract_strided_slice %15 {offsets = [2, 0], sizes = [1, 8], strides = [1, 1]} : vector<12x8xf32> to vector<1x8xf32>
    %146 = vector.broadcast %145 : vector<1x8xf32> to vector<16x8xf32>
    %147 = arith.addf %144, %146 : vector<16x8xf32>
    %c0_70 = arith.constant 0 : index
    %c2_71 = arith.constant 2 : index
    %c0_72 = arith.constant 0 : index
    %c0_73 = arith.constant 0 : index
    %148 = vector.load %arg4[%c0_70, %c2_71, %c0_72, %c0_73] : memref<1x4x32x8xbf16, #tpu.memory_space<vmem>>, vector<1x1x32x8xbf16>
    %149 = vector.shape_cast %148 : vector<1x1x32x8xbf16> to vector<32x8xbf16>
    %cst_74 = arith.constant dense<0.000000e+00> : vector<16x8xf32>
    %150 = tpu.matmul %16, %149, %cst_74 {dimension_numbers = #tpu.dot_dimension_numbers<[1], [0], [0], [1], [0, 0, 1, 1], [], []>} : vector<16x32xbf16>, vector<32x8xbf16>, vector<16x8xf32> -> vector<16x8xf32>
    %151 = vector.extract_strided_slice %15 {offsets = [6, 0], sizes = [1, 8], strides = [1, 1]} : vector<12x8xf32> to vector<1x8xf32>
    %152 = vector.broadcast %151 : vector<1x8xf32> to vector<16x8xf32>
    %153 = arith.addf %150, %152 : vector<16x8xf32>
    %c0_75 = arith.constant 0 : index
    %c2_76 = arith.constant 2 : index
    %c0_77 = arith.constant 0 : index
    %c0_78 = arith.constant 0 : index
    %154 = vector.load %arg5[%c0_75, %c2_76, %c0_77, %c0_78] : memref<1x4x32x8xbf16, #tpu.memory_space<vmem>>, vector<1x1x32x8xbf16>
    %155 = vector.shape_cast %154 : vector<1x1x32x8xbf16> to vector<32x8xbf16>
    %cst_79 = arith.constant dense<0.000000e+00> : vector<16x8xf32>
    %156 = tpu.matmul %16, %155, %cst_79 {dimension_numbers = #tpu.dot_dimension_numbers<[1], [0], [0], [1], [0, 0, 1, 1], [], []>} : vector<16x32xbf16>, vector<32x8xbf16>, vector<16x8xf32> -> vector<16x8xf32>
    %157 = vector.extract_strided_slice %15 {offsets = [10, 0], sizes = [1, 8], strides = [1, 1]} : vector<12x8xf32> to vector<1x8xf32>
    %158 = vector.broadcast %157 : vector<1x8xf32> to vector<16x8xf32>
    %159 = arith.addf %156, %158 : vector<16x8xf32>
    %160 = vector.extract_strided_slice %147 {offsets = [0, 0], sizes = [8, 8], strides = [1, 1]} : vector<16x8xf32> to vector<8x8xf32>
    %161 = arith.truncf %160 : vector<8x8xf32> to vector<8x8xbf16>
    %162 = vector.extract_strided_slice %153 {offsets = [0, 0], sizes = [8, 8], strides = [1, 1]} : vector<16x8xf32> to vector<8x8xf32>
    %163 = arith.truncf %162 : vector<8x8xf32> to vector<8x8xbf16>
    %164 = vector.extract_strided_slice %159 {offsets = [0, 0], sizes = [8, 8], strides = [1, 1]} : vector<16x8xf32> to vector<8x8xf32>
    %165 = arith.truncf %164 : vector<8x8xf32> to vector<8x8xbf16>
    %cst_80 = arith.constant dense<0.000000e+00> : vector<8x8xf32>
    %166 = tpu.matmul %161, %163, %cst_80 {dimension_numbers = #tpu.dot_dimension_numbers<[1], [1], [0], [0], [0, 0, 1, 0], [], []>} : vector<8x8xbf16>, vector<8x8xbf16>, vector<8x8xf32> -> vector<8x8xf32>
    %cst_81 = arith.constant dense<0xFF800000> : vector<8xf32>
    %167 = vector.multi_reduction <maximumf>, %166, %cst_81 [1] : vector<8x8xf32> to vector<8xf32>
    %168 = vector.shape_cast %167 : vector<8xf32> to vector<8x1xf32>
    %169 = vector.broadcast %168 : vector<8x1xf32> to vector<8x8xf32>
    %170 = arith.subf %166, %169 : vector<8x8xf32>
    %171 = math.exp %170 : vector<8x8xf32>
    %cst_82 = arith.constant dense<0.000000e+00> : vector<8xf32>
    %172 = vector.multi_reduction <add>, %171, %cst_82 [1] : vector<8x8xf32> to vector<8xf32>
    %173 = vector.shape_cast %172 : vector<8xf32> to vector<8x1xf32>
    %174 = tpu.reciprocal %173 {approx = true} : vector<8x1xf32> -> vector<8x1xf32>
    %175 = vector.broadcast %174 : vector<8x1xf32> to vector<8x8xf32>
    %176 = arith.mulf %171, %175 : vector<8x8xf32>
    %177 = arith.truncf %176 : vector<8x8xf32> to vector<8x8xbf16>
    %cst_83 = arith.constant dense<0.000000e+00> : vector<8x8xf32>
    %178 = tpu.matmul %177, %165, %cst_83 {dimension_numbers = #tpu.dot_dimension_numbers<[1], [0], [0], [1], [0, 0, 1, 1], [], []>} : vector<8x8xbf16>, vector<8x8xbf16>, vector<8x8xf32> -> vector<8x8xf32>
    %179 = vector.extract_strided_slice %147 {offsets = [8, 0], sizes = [8, 8], strides = [1, 1]} : vector<16x8xf32> to vector<8x8xf32>
    %180 = arith.truncf %179 : vector<8x8xf32> to vector<8x8xbf16>
    %181 = vector.extract_strided_slice %153 {offsets = [8, 0], sizes = [8, 8], strides = [1, 1]} : vector<16x8xf32> to vector<8x8xf32>
    %182 = arith.truncf %181 : vector<8x8xf32> to vector<8x8xbf16>
    %183 = vector.extract_strided_slice %159 {offsets = [8, 0], sizes = [8, 8], strides = [1, 1]} : vector<16x8xf32> to vector<8x8xf32>
    %184 = arith.truncf %183 : vector<8x8xf32> to vector<8x8xbf16>
    %cst_84 = arith.constant dense<0.000000e+00> : vector<8x8xf32>
    %185 = tpu.matmul %180, %182, %cst_84 {dimension_numbers = #tpu.dot_dimension_numbers<[1], [1], [0], [0], [0, 0, 1, 0], [], []>} : vector<8x8xbf16>, vector<8x8xbf16>, vector<8x8xf32> -> vector<8x8xf32>
    %cst_85 = arith.constant dense<0xFF800000> : vector<8xf32>
    %186 = vector.multi_reduction <maximumf>, %185, %cst_85 [1] : vector<8x8xf32> to vector<8xf32>
    %187 = vector.shape_cast %186 : vector<8xf32> to vector<8x1xf32>
    %188 = vector.broadcast %187 : vector<8x1xf32> to vector<8x8xf32>
    %189 = arith.subf %185, %188 : vector<8x8xf32>
    %190 = math.exp %189 : vector<8x8xf32>
    %cst_86 = arith.constant dense<0.000000e+00> : vector<8xf32>
    %191 = vector.multi_reduction <add>, %190, %cst_86 [1] : vector<8x8xf32> to vector<8xf32>
    %192 = vector.shape_cast %191 : vector<8xf32> to vector<8x1xf32>
    %193 = tpu.reciprocal %192 {approx = true} : vector<8x1xf32> -> vector<8x1xf32>
    %194 = vector.broadcast %193 : vector<8x1xf32> to vector<8x8xf32>
    %195 = arith.mulf %190, %194 : vector<8x8xf32>
    %196 = arith.truncf %195 : vector<8x8xf32> to vector<8x8xbf16>
    %cst_87 = arith.constant dense<0.000000e+00> : vector<8x8xf32>
    %197 = tpu.matmul %196, %184, %cst_87 {dimension_numbers = #tpu.dot_dimension_numbers<[1], [0], [0], [1], [0, 0, 1, 1], [], []>} : vector<8x8xbf16>, vector<8x8xbf16>, vector<8x8xf32> -> vector<8x8xf32>
    %198 = tpu.concatenate %178, %197 in 0 : vector<8x8xf32>, vector<8x8xf32> -> vector<16x8xf32>
    %199 = arith.truncf %198 : vector<16x8xf32> to vector<16x8xbf16>
    %c0_88 = arith.constant 0 : index
    %c2_89 = arith.constant 2 : index
    %c0_90 = arith.constant 0 : index
    %c0_91 = arith.constant 0 : index
    %200 = vector.load %arg6[%c0_88, %c2_89, %c0_90, %c0_91] : memref<1x4x8x32xbf16, #tpu.memory_space<vmem>>, vector<1x1x8x32xbf16>
    %201 = vector.shape_cast %200 : vector<1x1x8x32xbf16> to vector<8x32xbf16>
    %cst_92 = arith.constant dense<0.000000e+00> : vector<16x32xf32>
    %202 = tpu.matmul %199, %201, %cst_92 {dimension_numbers = #tpu.dot_dimension_numbers<[1], [0], [0], [1], [0, 0, 1, 1], [], []>} : vector<16x8xbf16>, vector<8x32xbf16>, vector<16x32xf32> -> vector<16x32xf32>
    %203 = arith.addf %141, %202 : vector<16x32xf32>
    %c0_93 = arith.constant 0 : index
    %c3 = arith.constant 3 : index
    %c0_94 = arith.constant 0 : index
    %c0_95 = arith.constant 0 : index
    %204 = vector.load %arg3[%c0_93, %c3, %c0_94, %c0_95] : memref<1x4x32x8xbf16, #tpu.memory_space<vmem>>, vector<1x1x32x8xbf16>
    %205 = vector.shape_cast %204 : vector<1x1x32x8xbf16> to vector<32x8xbf16>
    %cst_96 = arith.constant dense<0.000000e+00> : vector<16x8xf32>
    %206 = tpu.matmul %16, %205, %cst_96 {dimension_numbers = #tpu.dot_dimension_numbers<[1], [0], [0], [1], [0, 0, 1, 1], [], []>} : vector<16x32xbf16>, vector<32x8xbf16>, vector<16x8xf32> -> vector<16x8xf32>
    %207 = vector.extract_strided_slice %15 {offsets = [3, 0], sizes = [1, 8], strides = [1, 1]} : vector<12x8xf32> to vector<1x8xf32>
    %208 = vector.broadcast %207 : vector<1x8xf32> to vector<16x8xf32>
    %209 = arith.addf %206, %208 : vector<16x8xf32>
    %c0_97 = arith.constant 0 : index
    %c3_98 = arith.constant 3 : index
    %c0_99 = arith.constant 0 : index
    %c0_100 = arith.constant 0 : index
    %210 = vector.load %arg4[%c0_97, %c3_98, %c0_99, %c0_100] : memref<1x4x32x8xbf16, #tpu.memory_space<vmem>>, vector<1x1x32x8xbf16>
    %211 = vector.shape_cast %210 : vector<1x1x32x8xbf16> to vector<32x8xbf16>
    %cst_101 = arith.constant dense<0.000000e+00> : vector<16x8xf32>
    %212 = tpu.matmul %16, %211, %cst_101 {dimension_numbers = #tpu.dot_dimension_numbers<[1], [0], [0], [1], [0, 0, 1, 1], [], []>} : vector<16x32xbf16>, vector<32x8xbf16>, vector<16x8xf32> -> vector<16x8xf32>
    %213 = vector.extract_strided_slice %15 {offsets = [7, 0], sizes = [1, 8], strides = [1, 1]} : vector<12x8xf32> to vector<1x8xf32>
    %214 = vector.broadcast %213 : vector<1x8xf32> to vector<16x8xf32>
    %215 = arith.addf %212, %214 : vector<16x8xf32>
    %c0_102 = arith.constant 0 : index
    %c3_103 = arith.constant 3 : index
    %c0_104 = arith.constant 0 : index
    %c0_105 = arith.constant 0 : index
    %216 = vector.load %arg5[%c0_102, %c3_103, %c0_104, %c0_105] : memref<1x4x32x8xbf16, #tpu.memory_space<vmem>>, vector<1x1x32x8xbf16>
    %217 = vector.shape_cast %216 : vector<1x1x32x8xbf16> to vector<32x8xbf16>
    %cst_106 = arith.constant dense<0.000000e+00> : vector<16x8xf32>
    %218 = tpu.matmul %16, %217, %cst_106 {dimension_numbers = #tpu.dot_dimension_numbers<[1], [0], [0], [1], [0, 0, 1, 1], [], []>} : vector<16x32xbf16>, vector<32x8xbf16>, vector<16x8xf32> -> vector<16x8xf32>
    %219 = vector.extract_strided_slice %15 {offsets = [11, 0], sizes = [1, 8], strides = [1, 1]} : vector<12x8xf32> to vector<1x8xf32>
    %220 = vector.broadcast %219 : vector<1x8xf32> to vector<16x8xf32>
    %221 = arith.addf %218, %220 : vector<16x8xf32>
    %222 = vector.extract_strided_slice %209 {offsets = [0, 0], sizes = [8, 8], strides = [1, 1]} : vector<16x8xf32> to vector<8x8xf32>
    %223 = arith.truncf %222 : vector<8x8xf32> to vector<8x8xbf16>
    %224 = vector.extract_strided_slice %215 {offsets = [0, 0], sizes = [8, 8], strides = [1, 1]} : vector<16x8xf32> to vector<8x8xf32>
    %225 = arith.truncf %224 : vector<8x8xf32> to vector<8x8xbf16>
    %226 = vector.extract_strided_slice %221 {offsets = [0, 0], sizes = [8, 8], strides = [1, 1]} : vector<16x8xf32> to vector<8x8xf32>
    %227 = arith.truncf %226 : vector<8x8xf32> to vector<8x8xbf16>
    %cst_107 = arith.constant dense<0.000000e+00> : vector<8x8xf32>
    %228 = tpu.matmul %223, %225, %cst_107 {dimension_numbers = #tpu.dot_dimension_numbers<[1], [1], [0], [0], [0, 0, 1, 0], [], []>} : vector<8x8xbf16>, vector<8x8xbf16>, vector<8x8xf32> -> vector<8x8xf32>
    %cst_108 = arith.constant dense<0xFF800000> : vector<8xf32>
    %229 = vector.multi_reduction <maximumf>, %228, %cst_108 [1] : vector<8x8xf32> to vector<8xf32>
    %230 = vector.shape_cast %229 : vector<8xf32> to vector<8x1xf32>
    %231 = vector.broadcast %230 : vector<8x1xf32> to vector<8x8xf32>
    %232 = arith.subf %228, %231 : vector<8x8xf32>
    %233 = math.exp %232 : vector<8x8xf32>
    %cst_109 = arith.constant dense<0.000000e+00> : vector<8xf32>
    %234 = vector.multi_reduction <add>, %233, %cst_109 [1] : vector<8x8xf32> to vector<8xf32>
    %235 = vector.shape_cast %234 : vector<8xf32> to vector<8x1xf32>
    %236 = tpu.reciprocal %235 {approx = true} : vector<8x1xf32> -> vector<8x1xf32>
    %237 = vector.broadcast %236 : vector<8x1xf32> to vector<8x8xf32>
    %238 = arith.mulf %233, %237 : vector<8x8xf32>
    %239 = arith.truncf %238 : vector<8x8xf32> to vector<8x8xbf16>
    %cst_110 = arith.constant dense<0.000000e+00> : vector<8x8xf32>
    %240 = tpu.matmul %239, %227, %cst_110 {dimension_numbers = #tpu.dot_dimension_numbers<[1], [0], [0], [1], [0, 0, 1, 1], [], []>} : vector<8x8xbf16>, vector<8x8xbf16>, vector<8x8xf32> -> vector<8x8xf32>
    %241 = vector.extract_strided_slice %209 {offsets = [8, 0], sizes = [8, 8], strides = [1, 1]} : vector<16x8xf32> to vector<8x8xf32>
    %242 = arith.truncf %241 : vector<8x8xf32> to vector<8x8xbf16>
    %243 = vector.extract_strided_slice %215 {offsets = [8, 0], sizes = [8, 8], strides = [1, 1]} : vector<16x8xf32> to vector<8x8xf32>
    %244 = arith.truncf %243 : vector<8x8xf32> to vector<8x8xbf16>
    %245 = vector.extract_strided_slice %221 {offsets = [8, 0], sizes = [8, 8], strides = [1, 1]} : vector<16x8xf32> to vector<8x8xf32>
    %246 = arith.truncf %245 : vector<8x8xf32> to vector<8x8xbf16>
    %cst_111 = arith.constant dense<0.000000e+00> : vector<8x8xf32>
    %247 = tpu.matmul %242, %244, %cst_111 {dimension_numbers = #tpu.dot_dimension_numbers<[1], [1], [0], [0], [0, 0, 1, 0], [], []>} : vector<8x8xbf16>, vector<8x8xbf16>, vector<8x8xf32> -> vector<8x8xf32>
    %cst_112 = arith.constant dense<0xFF800000> : vector<8xf32>
    %248 = vector.multi_reduction <maximumf>, %247, %cst_112 [1] : vector<8x8xf32> to vector<8xf32>
    %249 = vector.shape_cast %248 : vector<8xf32> to vector<8x1xf32>
    %250 = vector.broadcast %249 : vector<8x1xf32> to vector<8x8xf32>
    %251 = arith.subf %247, %250 : vector<8x8xf32>
    %252 = math.exp %251 : vector<8x8xf32>
    %cst_113 = arith.constant dense<0.000000e+00> : vector<8xf32>
    %253 = vector.multi_reduction <add>, %252, %cst_113 [1] : vector<8x8xf32> to vector<8xf32>
    %254 = vector.shape_cast %253 : vector<8xf32> to vector<8x1xf32>
    %255 = tpu.reciprocal %254 {approx = true} : vector<8x1xf32> -> vector<8x1xf32>
    %256 = vector.broadcast %255 : vector<8x1xf32> to vector<8x8xf32>
    %257 = arith.mulf %252, %256 : vector<8x8xf32>
    %258 = arith.truncf %257 : vector<8x8xf32> to vector<8x8xbf16>
    %cst_114 = arith.constant dense<0.000000e+00> : vector<8x8xf32>
    %259 = tpu.matmul %258, %246, %cst_114 {dimension_numbers = #tpu.dot_dimension_numbers<[1], [0], [0], [1], [0, 0, 1, 1], [], []>} : vector<8x8xbf16>, vector<8x8xbf16>, vector<8x8xf32> -> vector<8x8xf32>
    %260 = tpu.concatenate %240, %259 in 0 : vector<8x8xf32>, vector<8x8xf32> -> vector<16x8xf32>
    %261 = arith.truncf %260 : vector<16x8xf32> to vector<16x8xbf16>
    %c0_115 = arith.constant 0 : index
    %c3_116 = arith.constant 3 : index
    %c0_117 = arith.constant 0 : index
    %c0_118 = arith.constant 0 : index
    %262 = vector.load %arg6[%c0_115, %c3_116, %c0_117, %c0_118] : memref<1x4x8x32xbf16, #tpu.memory_space<vmem>>, vector<1x1x8x32xbf16>
    %263 = vector.shape_cast %262 : vector<1x1x8x32xbf16> to vector<8x32xbf16>
    %cst_119 = arith.constant dense<0.000000e+00> : vector<16x32xf32>
    %264 = tpu.matmul %261, %263, %cst_119 {dimension_numbers = #tpu.dot_dimension_numbers<[1], [0], [0], [1], [0, 0, 1, 1], [], []>} : vector<16x8xbf16>, vector<8x32xbf16>, vector<16x32xf32> -> vector<16x32xf32>
    %265 = arith.addf %203, %264 : vector<16x32xf32>
    %266 = arith.addf %3, %265 : vector<16x32xf32>
    %267 = vector.broadcast %6 : vector<1x32xf32> to vector<16x32xf32>
    %268 = arith.addf %266, %267 : vector<16x32xf32>
    %cst_120 = arith.constant dense<0.000000e+00> : vector<16xf32>
    %269 = vector.multi_reduction <add>, %268, %cst_120 [1] : vector<16x32xf32> to vector<16xf32>
    %270 = vector.shape_cast %269 : vector<16xf32> to vector<16x1xf32>
    %cst_121 = arith.constant 3.200000e+01 : f32
    %271 = vector.broadcast %cst_121 : f32 to vector<16x1xf32>
    %272 = arith.divf %270, %271 : vector<16x1xf32>
    %273 = vector.broadcast %272 : vector<16x1xf32> to vector<16x32xf32>
    %274 = arith.subf %268, %273 : vector<16x32xf32>
    %275 = vector.broadcast %272 : vector<16x1xf32> to vector<16x32xf32>
    %276 = arith.subf %268, %275 : vector<16x32xf32>
    %277 = arith.mulf %274, %276 : vector<16x32xf32>
    %cst_122 = arith.constant dense<0.000000e+00> : vector<16xf32>
    %278 = vector.multi_reduction <add>, %277, %cst_122 [1] : vector<16x32xf32> to vector<16xf32>
    %279 = vector.shape_cast %278 : vector<16xf32> to vector<16x1xf32>
    %cst_123 = arith.constant 3.200000e+01 : f32
    %280 = vector.broadcast %cst_123 : f32 to vector<16x1xf32>
    %281 = arith.divf %279, %280 : vector<16x1xf32>
    %282 = vector.broadcast %272 : vector<16x1xf32> to vector<16x32xf32>
    %283 = arith.subf %268, %282 : vector<16x32xf32>
    %cst_124 = arith.constant 9.99999974E-6 : f32
    %284 = vector.broadcast %cst_124 : f32 to vector<16x1xf32>
    %285 = arith.addf %281, %284 : vector<16x1xf32>
    %286 = math.rsqrt %285 : vector<16x1xf32>
    %287 = vector.broadcast %286 : vector<16x1xf32> to vector<16x32xf32>
    %288 = arith.mulf %283, %287 : vector<16x32xf32>
    %289 = vector.broadcast %7 : vector<1x32xf32> to vector<16x32xf32>
    %290 = arith.mulf %288, %289 : vector<16x32xf32>
    %291 = vector.broadcast %8 : vector<1x32xf32> to vector<16x32xf32>
    %292 = arith.addf %290, %291 : vector<16x32xf32>
    %293 = arith.truncf %292 : vector<16x32xf32> to vector<16x32xbf16>
    %c0_125 = arith.constant 0 : index
    %c0_126 = arith.constant 0 : index
    %c0_127 = arith.constant 0 : index
    %294 = vector.load %arg7[%c0_125, %c0_126, %c0_127] : memref<1x32x64xbf16, #tpu.memory_space<vmem>>, vector<1x32x64xbf16>
    %295 = vector.shape_cast %294 : vector<1x32x64xbf16> to vector<32x64xbf16>
    %cst_128 = arith.constant dense<0.000000e+00> : vector<16x64xf32>
    %296 = tpu.matmul %293, %295, %cst_128 {dimension_numbers = #tpu.dot_dimension_numbers<[1], [0], [0], [1], [0, 0, 1, 1], [], []>} : vector<16x32xbf16>, vector<32x64xbf16>, vector<16x64xf32> -> vector<16x64xf32>
    %297 = vector.broadcast %13 : vector<1x64xf32> to vector<16x64xf32>
    %298 = arith.addf %296, %297 : vector<16x64xf32>
    %cst_129 = arith.constant 0.000000e+00 : f32
    %299 = vector.broadcast %cst_129 : f32 to vector<16x64xf32>
    %300 = arith.maximumf %298, %299 : vector<16x64xf32>
    %301 = arith.truncf %300 : vector<16x64xf32> to vector<16x64xbf16>
    %c0_130 = arith.constant 0 : index
    %c0_131 = arith.constant 0 : index
    %c0_132 = arith.constant 0 : index
    %302 = vector.load %arg8[%c0_130, %c0_131, %c0_132] : memref<1x64x32xbf16, #tpu.memory_space<vmem>>, vector<1x64x32xbf16>
    %303 = vector.shape_cast %302 : vector<1x64x32xbf16> to vector<64x32xbf16>
    %cst_133 = arith.constant dense<0.000000e+00> : vector<16x32xf32>
    %304 = tpu.matmul %301, %303, %cst_133 {dimension_numbers = #tpu.dot_dimension_numbers<[1], [0], [0], [1], [0, 0, 1, 1], [], []>} : vector<16x64xbf16>, vector<64x32xbf16>, vector<16x32xf32> -> vector<16x32xf32>
    %305 = vector.broadcast %9 : vector<1x32xf32> to vector<16x32xf32>
    %306 = arith.addf %304, %305 : vector<16x32xf32>
    %307 = arith.addf %292, %306 : vector<16x32xf32>
    %cst_134 = arith.constant dense<0.000000e+00> : vector<16xf32>
    %308 = vector.multi_reduction <add>, %307, %cst_134 [1] : vector<16x32xf32> to vector<16xf32>
    %309 = vector.shape_cast %308 : vector<16xf32> to vector<16x1xf32>
    %cst_135 = arith.constant 3.200000e+01 : f32
    %310 = vector.broadcast %cst_135 : f32 to vector<16x1xf32>
    %311 = arith.divf %309, %310 : vector<16x1xf32>
    %312 = vector.broadcast %311 : vector<16x1xf32> to vector<16x32xf32>
    %313 = arith.subf %307, %312 : vector<16x32xf32>
    %314 = vector.broadcast %311 : vector<16x1xf32> to vector<16x32xf32>
    %315 = arith.subf %307, %314 : vector<16x32xf32>
    %316 = arith.mulf %313, %315 : vector<16x32xf32>
    %cst_136 = arith.constant dense<0.000000e+00> : vector<16xf32>
    %317 = vector.multi_reduction <add>, %316, %cst_136 [1] : vector<16x32xf32> to vector<16xf32>
    %318 = vector.shape_cast %317 : vector<16xf32> to vector<16x1xf32>
    %cst_137 = arith.constant 3.200000e+01 : f32
    %319 = vector.broadcast %cst_137 : f32 to vector<16x1xf32>
    %320 = arith.divf %318, %319 : vector<16x1xf32>
    %321 = vector.broadcast %311 : vector<16x1xf32> to vector<16x32xf32>
    %322 = arith.subf %307, %321 : vector<16x32xf32>
    %cst_138 = arith.constant 9.99999974E-6 : f32
    %323 = vector.broadcast %cst_138 : f32 to vector<16x1xf32>
    %324 = arith.addf %320, %323 : vector<16x1xf32>
    %325 = math.rsqrt %324 : vector<16x1xf32>
    %326 = vector.broadcast %325 : vector<16x1xf32> to vector<16x32xf32>
    %327 = arith.mulf %322, %326 : vector<16x32xf32>
    %328 = vector.broadcast %10 : vector<1x32xf32> to vector<16x32xf32>
    %329 = arith.mulf %327, %328 : vector<16x32xf32>
    %330 = vector.broadcast %11 : vector<1x32xf32> to vector<16x32xf32>
    %331 = arith.addf %329, %330 : vector<16x32xf32>
    %c0_139 = arith.constant 0 : index
    %c0_140 = arith.constant 0 : index
    %332 = vector.load %arg13[%c0_139, %c0_140] : memref<16x32xf32, #tpu.memory_space<vmem>>, vector<16x32xf32>
    tpu.vector_store %arg13[%c0_139, %c0_140], %331 {strides = array<i32>} : memref<16x32xf32, #tpu.memory_space<vmem>>, vector<16x32xf32>,
    %c0_141 = arith.constant 0 : index
    %c0_142 = arith.constant 0 : index
    %c0_143 = arith.constant 0 : index
    %333 = vector.load %arg12[%c0_141, %c0_142, %c0_143] : memref<1x16x32xf32, #tpu.memory_space<vmem>>, vector<1x16x32xf32>
    %334 = vector.shape_cast %333 : vector<1x16x32xf32> to vector<16x32xf32>
    %335 = vector.shape_cast %331 : vector<16x32xf32> to vector<1x16x32xf32>
    tpu.vector_store %arg12[%c0_141, %c0_142, %c0_143], %335 {strides = array<i32>} : memref<1x16x32xf32, #tpu.memory_space<vmem>>, vector<1x16x32xf32>,
    return
  }
  func.func @transform_0(%arg0: i32, %arg1: i32) -> (i32, i32) {
    %c0_i32 = arith.constant 0 : i32
    %c0_i32_0 = arith.constant 0 : i32
    return %arg0, %c0_i32 : i32, i32
  }
  func.func @transform_1(%arg0: i32, %arg1: i32) -> (i32, i32, i32, i32) {
    %c0_i32 = arith.constant 0 : i32
    %c0_i32_0 = arith.constant 0 : i32
    %c0_i32_1 = arith.constant 0 : i32
    %c0_i32_2 = arith.constant 0 : i32
    return %arg1, %c0_i32, %c0_i32_0, %c0_i32_1 : i32, i32, i32, i32
  }
  func.func @transform_2(%arg0: i32, %arg1: i32) -> (i32, i32, i32, i32) {
    %c0_i32 = arith.constant 0 : i32
    %c0_i32_0 = arith.constant 0 : i32
    %c0_i32_1 = arith.constant 0 : i32
    %c0_i32_2 = arith.constant 0 : i32
    return %arg1, %c0_i32, %c0_i32_0, %c0_i32_1 : i32, i32, i32, i32
  }
  func.func @transform_3(%arg0: i32, %arg1: i32) -> (i32, i32, i32, i32) {
    %c0_i32 = arith.constant 0 : i32
    %c0_i32_0 = arith.constant 0 : i32
    %c0_i32_1 = arith.constant 0 : i32
    %c0_i32_2 = arith.constant 0 : i32
    return %arg1, %c0_i32, %c0_i32_0, %c0_i32_1 : i32, i32, i32, i32
  }
  func.func @transform_4(%arg0: i32, %arg1: i32) -> (i32, i32, i32, i32) {
    %c0_i32 = arith.constant 0 : i32
    %c0_i32_0 = arith.constant 0 : i32
    %c0_i32_1 = arith.constant 0 : i32
    %c0_i32_2 = arith.constant 0 : i32
    return %arg1, %c0_i32, %c0_i32_0, %c0_i32_1 : i32, i32, i32, i32
  }
  func.func @transform_5(%arg0: i32, %arg1: i32) -> (i32, i32, i32) {
    %c0_i32 = arith.constant 0 : i32
    %c0_i32_0 = arith.constant 0 : i32
    %c0_i32_1 = arith.constant 0 : i32
    return %arg1, %c0_i32, %c0_i32_0 : i32, i32, i32
  }
  func.func @transform_6(%arg0: i32, %arg1: i32) -> (i32, i32, i32) {
    %c0_i32 = arith.constant 0 : i32
    %c0_i32_0 = arith.constant 0 : i32
    %c0_i32_1 = arith.constant 0 : i32
    return %arg1, %c0_i32, %c0_i32_0 : i32, i32, i32
  }
  func.func @transform_7(%arg0: i32, %arg1: i32) -> (i32, i32, i32) {
    %c0_i32 = arith.constant 0 : i32
    %c0_i32_0 = arith.constant 0 : i32
    %c0_i32_1 = arith.constant 0 : i32
    return %arg1, %c0_i32, %c0_i32_0 : i32, i32, i32
  }
  func.func @transform_8(%arg0: i32, %arg1: i32) -> (i32, i32, i32) {
    %c0_i32 = arith.constant 0 : i32
    %c0_i32_0 = arith.constant 0 : i32
    %c0_i32_1 = arith.constant 0 : i32
    return %arg1, %c0_i32, %c0_i32_0 : i32, i32, i32
  }
  func.func @transform_9(%arg0: i32, %arg1: i32) -> (i32, i32, i32) {
    %c0_i32 = arith.constant 0 : i32
    %c0_i32_0 = arith.constant 0 : i32
    %c0_i32_1 = arith.constant 0 : i32
    return %arg1, %c0_i32, %c0_i32_0 : i32, i32, i32
  }
  func.func @transform_10(%arg0: i32, %arg1: i32) -> (i32, i32, i32) {
    %c0_i32 = arith.constant 0 : i32
    %c0_i32_0 = arith.constant 0 : i32
    return %arg1, %arg0, %c0_i32 : i32, i32, i32
  }
}

</mosaic_0001>

<llo_original>
// kernel: tpu_custom_call.1
$region0: #{tpu_custom_call.1}
  #allocation0 [shape = 'u32[]', space=smem, size = 0x4, offset = 0x4, fixed_abs, tag = 'smem constant byte address 0x4 - core index']
  #allocation1 [shape = 'u32[72,128]{1,0:T(1,128)}', space=vmem, size = 0x9000, scoped, tag = 'internal scratch']
  #allocation2 [shape = 'f32[16,32]{1,0:T(8,128)}', space=vmem, size = 0x2000, scoped, tag = 'scratch operand']
  %s0 = inlined_call_operand.vmem [shape: f32[32,32], index: 0, kind: input, shape index: {}]
  %s1 = inlined_call_operand.vmem [shape: bf16[2,4,32,8], index: 1, kind: input, shape index: {}]
  %s2 = inlined_call_operand.vmem [shape: bf16[2,4,32,8], index: 2, kind: input, shape index: {}]
  %s3 = inlined_call_operand.vmem [shape: bf16[2,4,32,8], index: 3, kind: input, shape index: {}]
  %s4 = inlined_call_operand.vmem [shape: bf16[2,4,8,32], index: 4, kind: input, shape index: {}]
  %s5 = inlined_call_operand.vmem [shape: bf16[2,32,64], index: 5, kind: input, shape index: {}]
  %s6 = inlined_call_operand.vmem [shape: bf16[2,64,32], index: 6, kind: input, shape index: {}]
  %s7 = inlined_call_operand.vmem [shape: f32[2,12,8], index: 7, kind: input, shape index: {}]
  %s8 = inlined_call_operand.vmem [shape: f32[2,6,32], index: 8, kind: input, shape index: {}]
  %s9 = inlined_call_operand.vmem [shape: f32[2,1,64], index: 9, kind: input, shape index: {}]
  %s10 = inlined_call_operand.hbm [shape: f32[2,32,32], index: 10, kind: output, shape index: {}]
  %s11 = sld [smem:[#allocation0]]
  $region77: #{tpu_custom_call.1} parent=0
    _
  %s13 = ssub.s32 1, %s11
  %s14 = scalar_select 0, %s13, %s11
  $region1: #{tpu_custom_call.1} parent=0
    #allocation3 [shape = 'u8[16384]{0}', space=vmem, size = 0x4000, scoped, tag = 'output window, operand 0']
    #allocation4 [shape = 's32[2]{0}', space=sflag, size = 0x8, scoped, tag = 'scoped memory for tpu_custom_call.1']
    %15 = vsyncpa [#allocation4], 0
    %s16 = scalar_lea.sflag [#allocation4], 1
    %17 = vsyncpa %s16, 0
    loop: start=0, step=1, limit=6
    $region2: #{tpu_custom_call.1} parent=1 // loop_pre_header
      _
    $region3: #{tpu_custom_call.1} parent=1 // loop_header
      %s19 = sphi 0, %s23
      %p20 = scmp.ge.s32.totalorder %s19, 6
      %s26 = sphi 0, %s38
      %s27 = sphi 0, %s34
      %s28 = sphi 0, %s26
      %s29 = sphi 0, %s27
      %s30 = sphi 0, %s28
      %s31 = sphi 0, %s29
      %s41 = sphi 0, %s43
      %s44 = sphi 0, %s41
      %s45 = sphi 0, %s44
      %s61 = sphi 0, %s45
      %s67 = sphi 0, %s69
      %s70 = sphi 0, %s67
      %s71 = sphi 0, %s70
      %s87 = sphi 0, %s71
      %s93 = sphi 0, %s95
      %s96 = sphi 0, %s93
      %s97 = sphi 0, %s96
      %s113 = sphi 0, %s97
      %s119 = sphi 0, %s121
      %s122 = sphi 0, %s119
      %s123 = sphi 0, %s122
      %s139 = sphi 0, %s123
      %s145 = sphi 0, %s147
      %s148 = sphi 0, %s145
      %s149 = sphi 0, %s148
      %s165 = sphi 0, %s149
      %s171 = sphi 0, %s173
      %s174 = sphi 0, %s171
      %s175 = sphi 0, %s174
      %s191 = sphi 0, %s175
      %s197 = sphi 0, %s199
      %s200 = sphi 0, %s197
      %s201 = sphi 0, %s200
      %s217 = sphi 0, %s201
      %s223 = sphi 0, %s225
      %s226 = sphi 0, %s223
      %s227 = sphi 0, %s226
      %s243 = sphi 0, %s227
      %s249 = sphi 0, %s251
      %s252 = sphi 0, %s249
      %s253 = sphi 0, %s252
      %s269 = sphi 0, %s253
      %s275 = sphi 0, %s277
      %s278 = sphi 0, %s275
      %s279 = sphi 0, %s278
      %s295 = sphi 0, %s279
      %s303 = sphi 0, %s305
      %s306 = sphi 0, %s303
      %s307 = sphi 0, %s306
      %s323 = sphi 0, %s307
    $region4: #{tpu_custom_call.1} parent=1 // loop_header_branch
      %22 = sbr.rel (%p20) target = $region8
    $region5: #{tpu_custom_call.1} parent=1 // loop_body
      %s24 = ssub.s32 %s19, 1
      %s25 = ssub.s32 %s19, 2
      %s32 = sadd.s32 1, %s27
      %p33 = scmp.ge.s32.totalorder %s32, 2
      %s34 = scalar_select %p33, 0, %s32
      %s35 = sadd.s32 1, %s26
      %s36 = scalar_select %p33, %s35, %s26
      %p37 = scmp.ge.s32.totalorder %s36, 2
      %s38 = scalar_select %p37, 0, %s36
      %s39 = ssub.s32 %s26, %s38
      %p40 = scmp.eq.s32.totalorder %s39, 0
      %s42 = sadd.s32 %s41, 1
      %s43 = scalar_select %p40, %s41, %s42
      %p46 = pneg %p40
      %p47 = scmp.eq.s32.totalorder %s19, 3
      %p48 = por %p46, %p47
      %p49 = scmp.ne.s32.totalorder %s41, %s44
      %p50 = scmp.eq.s32.totalorder %s19, 0
      %p51 = por %p49, %p50
      %p52 = scmp.ne.s32.totalorder %s41, %s44
      %p53 = scmp.eq.s32.totalorder %s24, 3
      %p54 = por %p52, %p53
      %p55 = scmp.ne.s32.totalorder %s44, %s45
      %p56 = scmp.eq.s32.totalorder %s24, 0
      %p57 = por %p55, %p56
      %p58 = scmp.ne.s32.totalorder %s44, %s45
      %p59 = scmp.eq.s32.totalorder %s25, 3
      %p60 = por %p58, %p59
      %p62 = scmp.ne.s32.totalorder %s45, %s61
      %p63 = scmp.eq.s32.totalorder %s25, 0
      %p64 = por %p62, %p63
      %s65 = ssub.s32 %s27, %s34
      %p66 = scmp.eq.s32.totalorder %s65, 0
      %s68 = sadd.s32 %s67, 1
      %s69 = scalar_select %p66, %s67, %s68
      %p72 = pneg %p66
      %p73 = scmp.eq.s32.totalorder %s19, 3
      %p74 = por %p72, %p73
      %p75 = scmp.ne.s32.totalorder %s67, %s70
      %p76 = scmp.eq.s32.totalorder %s19, 0
      %p77 = por %p75, %p76
      %p78 = scmp.ne.s32.totalorder %s67, %s70
      %p79 = scmp.eq.s32.totalorder %s24, 3
      %p80 = por %p78, %p79
      %p81 = scmp.ne.s32.totalorder %s70, %s71
      %p82 = scmp.eq.s32.totalorder %s24, 0
      %p83 = por %p81, %p82
      %p84 = scmp.ne.s32.totalorder %s70, %s71
      %p85 = scmp.eq.s32.totalorder %s25, 3
      %p86 = por %p84, %p85
      %p88 = scmp.ne.s32.totalorder %s71, %s87
      %p89 = scmp.eq.s32.totalorder %s25, 0
      %p90 = por %p88, %p89
      %s91 = ssub.s32 %s27, %s34
      %p92 = scmp.eq.s32.totalorder %s91, 0
      %s94 = sadd.s32 %s93, 1
      %s95 = scalar_select %p92, %s93, %s94
      %p98 = pneg %p92
      %p99 = scmp.eq.s32.totalorder %s19, 3
      %p100 = por %p98, %p99
      %p101 = scmp.ne.s32.totalorder %s93, %s96
      %p102 = scmp.eq.s32.totalorder %s19, 0
      %p103 = por %p101, %p102
      %p104 = scmp.ne.s32.totalorder %s93, %s96
      %p105 = scmp.eq.s32.totalorder %s24, 3
      %p106 = por %p104, %p105
      %p107 = scmp.ne.s32.totalorder %s96, %s97
      %p108 = scmp.eq.s32.totalorder %s24, 0
      %p109 = por %p107, %p108
      %p110 = scmp.ne.s32.totalorder %s96, %s97
      %p111 = scmp.eq.s32.totalorder %s25, 3
      %p112 = por %p110, %p111
      %p114 = scmp.ne.s32.totalorder %s97, %s113
      %p115 = scmp.eq.s32.totalorder %s25, 0
      %p116 = por %p114, %p115
      %s117 = ssub.s32 %s27, %s34
      %p118 = scmp.eq.s32.totalorder %s117, 0
      %s120 = sadd.s32 %s119, 1
      %s121 = scalar_select %p118, %s119, %s120
      %p124 = pneg %p118
      %p125 = scmp.eq.s32.totalorder %s19, 3
      %p126 = por %p124, %p125
      %p127 = scmp.ne.s32.totalorder %s119, %s122
      %p128 = scmp.eq.s32.totalorder %s19, 0
      %p129 = por %p127, %p128
      %p130 = scmp.ne.s32.totalorder %s119, %s122
      %p131 = scmp.eq.s32.totalorder %s24, 3
      %p132 = por %p130, %p131
      %p133 = scmp.ne.s32.totalorder %s122, %s123
      %p134 = scmp.eq.s32.totalorder %s24, 0
      %p135 = por %p133, %p134
      %p136 = scmp.ne.s32.totalorder %s122, %s123
      %p137 = scmp.eq.s32.totalorder %s25, 3
      %p138 = por %p136, %p137
      %p140 = scmp.ne.s32.totalorder %s123, %s139
      %p141 = scmp.eq.s32.totalorder %s25, 0
      %p142 = por %p140, %p141
      %s143 = ssub.s32 %s27, %s34
      %p144 = scmp.eq.s32.totalorder %s143, 0
      %s146 = sadd.s32 %s145, 1
      %s147 = scalar_select %p144, %s145, %s146
      %p150 = pneg %p144
      %p151 = scmp.eq.s32.totalorder %s19, 3
      %p152 = por %p150, %p151
      %p153 = scmp.ne.s32.totalorder %s145, %s148
      %p154 = scmp.eq.s32.totalorder %s19, 0
      %p155 = por %p153, %p154
      %p156 = scmp.ne.s32.totalorder %s145, %s148
      %p157 = scmp.eq.s32.totalorder %s24, 3
      %p158 = por %p156, %p157
      %p159 = scmp.ne.s32.totalorder %s148, %s149
      %p160 = scmp.eq.s32.totalorder %s24, 0
      %p161 = por %p159, %p160
      %p162 = scmp.ne.s32.totalorder %s148, %s149
      %p163 = scmp.eq.s32.totalorder %s25, 3
      %p164 = por %p162, %p163
      %p166 = scmp.ne.s32.totalorder %s149, %s165
      %p167 = scmp.eq.s32.totalorder %s25, 0
      %p168 = por %p166, %p167
      %s169 = ssub.s32 %s27, %s34
      %p170 = scmp.eq.s32.totalorder %s169, 0
      %s172 = sadd.s32 %s171, 1
      %s173 = scalar_select %p170, %s171, %s172
      %p176 = pneg %p170
      %p177 = scmp.eq.s32.totalorder %s19, 3
      %p178 = por %p176, %p177
      %p179 = scmp.ne.s32.totalorder %s171, %s174
      %p180 = scmp.eq.s32.totalorder %s19, 0
      %p181 = por %p179, %p180
      %p182 = scmp.ne.s32.totalorder %s171, %s174
      %p183 = scmp.eq.s32.totalorder %s24, 3
      %p184 = por %p182, %p183
      %p185 = scmp.ne.s32.totalorder %s174, %s175
      %p186 = scmp.eq.s32.totalorder %s24, 0
      %p187 = por %p185, %p186
      %p188 = scmp.ne.s32.totalorder %s174, %s175
      %p189 = scmp.eq.s32.totalorder %s25, 3
      %p190 = por %p188, %p189
      %p192 = scmp.ne.s32.totalorder %s175, %s191
      %p193 = scmp.eq.s32.totalorder %s25, 0
      %p194 = por %p192, %p193
      %s195 = ssub.s32 %s27, %s34
      %p196 = scmp.eq.s32.totalorder %s195, 0
      %s198 = sadd.s32 %s197, 1
      %s199 = scalar_select %p196, %s197, %s198
      %p202 = pneg %p196
      %p203 = scmp.eq.s32.totalorder %s19, 3
      %p204 = por %p202, %p203
      %p205 = scmp.ne.s32.totalorder %s197, %s200
      %p206 = scmp.eq.s32.totalorder %s19, 0
      %p207 = por %p205, %p206
      %p208 = scmp.ne.s32.totalorder %s197, %s200
      %p209 = scmp.eq.s32.totalorder %s24, 3
      %p210 = por %p208, %p209
      %p211 = scmp.ne.s32.totalorder %s200, %s201
      %p212 = scmp.eq.s32.totalorder %s24, 0
      %p213 = por %p211, %p212
      %p214 = scmp.ne.s32.totalorder %s200, %s201
      %p215 = scmp.eq.s32.totalorder %s25, 3
      %p216 = por %p214, %p215
      %p218 = scmp.ne.s32.totalorder %s201, %s217
      %p219 = scmp.eq.s32.totalorder %s25, 0
      %p220 = por %p218, %p219
      %s221 = ssub.s32 %s27, %s34
      %p222 = scmp.eq.s32.totalorder %s221, 0
      %s224 = sadd.s32 %s223, 1
      %s225 = scalar_select %p222, %s223, %s224
      %p228 = pneg %p222
      %p229 = scmp.eq.s32.totalorder %s19, 3
      %p230 = por %p228, %p229
      %p231 = scmp.ne.s32.totalorder %s223, %s226
      %p232 = scmp.eq.s32.totalorder %s19, 0
      %p233 = por %p231, %p232
      %p234 = scmp.ne.s32.totalorder %s223, %s226
      %p235 = scmp.eq.s32.totalorder %s24, 3
      %p236 = por %p234, %p235
      %p237 = scmp.ne.s32.totalorder %s226, %s227
      %p238 = scmp.eq.s32.totalorder %s24, 0
      %p239 = por %p237, %p238
      %p240 = scmp.ne.s32.totalorder %s226, %s227
      %p241 = scmp.eq.s32.totalorder %s25, 3
      %p242 = por %p240, %p241
      %p244 = scmp.ne.s32.totalorder %s227, %s243
      %p245 = scmp.eq.s32.totalorder %s25, 0
      %p246 = por %p244, %p245
      %s247 = ssub.s32 %s27, %s34
      %p248 = scmp.eq.s32.totalorder %s247, 0
      %s250 = sadd.s32 %s249, 1
      %s251 = scalar_select %p248, %s249, %s250
      %p254 = pneg %p248
      %p255 = scmp.eq.s32.totalorder %s19, 3
      %p256 = por %p254, %p255
      %p257 = scmp.ne.s32.totalorder %s249, %s252
      %p258 = scmp.eq.s32.totalorder %s19, 0
      %p259 = por %p257, %p258
      %p260 = scmp.ne.s32.totalorder %s249, %s252
      %p261 = scmp.eq.s32.totalorder %s24, 3
      %p262 = por %p260, %p261
      %p263 = scmp.ne.s32.totalorder %s252, %s253
      %p264 = scmp.eq.s32.totalorder %s24, 0
      %p265 = por %p263, %p264
      %p266 = scmp.ne.s32.totalorder %s252, %s253
      %p267 = scmp.eq.s32.totalorder %s25, 3
      %p268 = por %p266, %p267
      %p270 = scmp.ne.s32.totalorder %s253, %s269
      %p271 = scmp.eq.s32.totalorder %s25, 0
      %p272 = por %p270, %p271
      %s273 = ssub.s32 %s27, %s34
      %p274 = scmp.eq.s32.totalorder %s273, 0
      %s276 = sadd.s32 %s275, 1
      %s277 = scalar_select %p274, %s275, %s276
      %p280 = pneg %p274
      %p281 = scmp.eq.s32.totalorder %s19, 3
      %p282 = por %p280, %p281
      %p283 = scmp.ne.s32.totalorder %s275, %s278
      %p284 = scmp.eq.s32.totalorder %s19, 0
      %p285 = por %p283, %p284
      %p286 = scmp.ne.s32.totalorder %s275, %s278
      %p287 = scmp.eq.s32.totalorder %s24, 3
      %p288 = por %p286, %p287
      %p289 = scmp.ne.s32.totalorder %s278, %s279
      %p290 = scmp.eq.s32.totalorder %s24, 0
      %p291 = por %p289, %p290
      %p292 = scmp.ne.s32.totalorder %s278, %s279
      %p293 = scmp.eq.s32.totalorder %s25, 3
      %p294 = por %p292, %p293
      %p296 = scmp.ne.s32.totalorder %s279, %s295
      %p297 = scmp.eq.s32.totalorder %s25, 0
      %p298 = por %p296, %p297
      %s299 = ssub.s32 %s27, %s34
      %s300 = ssub.s32 %s26, %s38
      %s301 = sor.u32 %s299, %s300
      %p302 = scmp.eq.s32.totalorder %s301, 0
      %s304 = sadd.s32 %s303, 1
      %s305 = scalar_select %p302, %s303, %s304
      %p308 = pneg %p302
      %p309 = scmp.eq.s32.totalorder %s19, 3
      %p310 = por %p308, %p309
      %p311 = scmp.ne.s32.totalorder %s303, %s306
      %p312 = scmp.eq.s32.totalorder %s19, 0
      %p313 = por %p311, %p312
      %p314 = scmp.ne.s32.totalorder %s303, %s306
      %p315 = scmp.eq.s32.totalorder %s24, 3
      %p316 = por %p314, %p315
      %p317 = scmp.ne.s32.totalorder %s306, %s307
      %p318 = scmp.eq.s32.totalorder %s24, 0
      %p319 = por %p317, %p318
      %p320 = scmp.ne.s32.totalorder %s306, %s307
      %p321 = scmp.eq.s32.totalorder %s25, 3
      %p322 = por %p320, %p321
      %p324 = scmp.ne.s32.totalorder %s307, %s323
      %p325 = scmp.eq.s32.totalorder %s25, 0
      %p326 = por %p324, %p325
      %p327 = scmp.le.s32.totalorder 1, %s19
      %p328 = scmp.lt.s32.totalorder %s19, 5
      %p329 = pnand %p327, %p328
      %p330 = pneg %p329
      // Predicated region
      $region9: #{tpu_custom_call.1} parent=5 // pred_check
        _
      $region10: #{tpu_custom_call.1} parent=5 // pred_check_branch
        %332 = sbr.rel (%p329) target = $region12
      $region11: #{tpu_custom_call.1} parent=5 // pred_region
        %s333 = ssub.s32 %s19, 1
      $region12: #{tpu_custom_call.1} parent=5 // pred_fallthru
        _
      %p334 = scmp.lt.s32.totalorder %s19, 4
      // Predicated region
      $region13: #{tpu_custom_call.1} parent=5 // pred_check
        %p335 = pneg %p334
      $region14: #{tpu_custom_call.1} parent=5 // pred_check_branch
        %337 = sbr.rel (%p335) target = $region16
      $region15: #{tpu_custom_call.1} parent=5 // pred_region
        // Predicated region
        $region17: #{tpu_custom_call.1} parent=15 // pred_check
          %p338 = pneg %p51
        $region18: #{tpu_custom_call.1} parent=15 // pred_check_branch
          %340 = sbr.rel (%p338) target = $region20
        $region19: #{tpu_custom_call.1} parent=15 // pred_region
          %s341 = smul.u32 2, %s26
          %p342 = scmp.lt.s32.totalorder %s341, 3
          %s343 = scalar_select %p342, %s341, 3
          %s344 = smul.addr %s343, 8
          %s345 = scalar_lea.vmem %s0, %s344
          %s346 = smul.u32 2, %s26
        $region20: #{tpu_custom_call.1} parent=15 // pred_fallthru
          _
        // Predicated region
        $region21: #{tpu_custom_call.1} parent=15 // pred_check
          %p347 = pneg %p77
        $region22: #{tpu_custom_call.1} parent=15 // pred_check_branch
          %349 = sbr.rel (%p347) target = $region24
        $region23: #{tpu_custom_call.1} parent=15 // pred_region
          %p350 = scmp.lt.s32.totalorder %s27, 1
          %s351 = scalar_select %p350, %s27, 1
          %s352 = smul.addr %s351, 16
          %s353 = smul.addr %s352, 4
          %s354 = scalar_lea.vmem %s1, %s353
        $region24: #{tpu_custom_call.1} parent=15 // pred_fallthru
          _
        // Predicated region
        $region25: #{tpu_custom_call.1} parent=15 // pred_check
          %p355 = pneg %p103
        $region26: #{tpu_custom_call.1} parent=15 // pred_check_branch
          %357 = sbr.rel (%p355) target = $region28
        $region27: #{tpu_custom_call.1} parent=15 // pred_region
          %p358 = scmp.lt.s32.totalorder %s27, 1
          %s359 = scalar_select %p358, %s27, 1
          %s360 = smul.addr %s359, 16
          %s361 = smul.addr %s360, 4
          %s362 = scalar_lea.vmem %s2, %s361
        $region28: #{tpu_custom_call.1} parent=15 // pred_fallthru
          _
        // Predicated region
        $region29: #{tpu_custom_call.1} parent=15 // pred_check
          %p363 = pneg %p129
        $region30: #{tpu_custom_call.1} parent=15 // pred_check_branch
          %365 = sbr.rel (%p363) target = $region32
        $region31: #{tpu_custom_call.1} parent=15 // pred_region
          %p366 = scmp.lt.s32.totalorder %s27, 1
          %s367 = scalar_select %p366, %s27, 1
          %s368 = smul.addr %s367, 16
          %s369 = smul.addr %s368, 4
          %s370 = scalar_lea.vmem %s3, %s369
        $region32: #{tpu_custom_call.1} parent=15 // pred_fallthru
          _
        // Predicated region
        $region33: #{tpu_custom_call.1} parent=15 // pred_check
          %p371 = pneg %p155
        $region34: #{tpu_custom_call.1} parent=15 // pred_check_branch
          %373 = sbr.rel (%p371) target = $region36
        $region35: #{tpu_custom_call.1} parent=15 // pred_region
          %p374 = scmp.lt.s32.totalorder %s27, 1
          %s375 = scalar_select %p374, %s27, 1
          %s376 = smul.addr %s375, 4
          %s377 = smul.addr %s376, 4
          %s378 = scalar_lea.vmem %s4, %s377
        $region36: #{tpu_custom_call.1} parent=15 // pred_fallthru
          _
        // Predicated region
        $region37: #{tpu_custom_call.1} parent=15 // pred_check
          %p379 = pneg %p181
        $region38: #{tpu_custom_call.1} parent=15 // pred_check_branch
          %381 = sbr.rel (%p379) target = $region40
        $region39: #{tpu_custom_call.1} parent=15 // pred_region
          %p382 = scmp.lt.s32.totalorder %s27, 1
          %s383 = scalar_select %p382, %s27, 1
          %s384 = smul.addr %s383, 4
          %s385 = smul.addr %s384, 4
          %s386 = scalar_lea.vmem %s5, %s385
        $region40: #{tpu_custom_call.1} parent=15 // pred_fallthru
          _
        // Predicated region
        $region41: #{tpu_custom_call.1} parent=15 // pred_check
          %p387 = pneg %p207
        $region42: #{tpu_custom_call.1} parent=15 // pred_check_branch
          %389 = sbr.rel (%p387) target = $region44
        $region43: #{tpu_custom_call.1} parent=15 // pred_region
          %p390 = scmp.lt.s32.totalorder %s27, 1
          %s391 = scalar_select %p390, %s27, 1
          %s392 = smul.addr %s391, 8
          %s393 = smul.addr %s392, 4
          %s394 = scalar_lea.vmem %s6, %s393
        $region44: #{tpu_custom_call.1} parent=15 // pred_fallthru
          _
        // Predicated region
        $region45: #{tpu_custom_call.1} parent=15 // pred_check
          %p395 = pneg %p233
        $region46: #{tpu_custom_call.1} parent=15 // pred_check_branch
          %397 = sbr.rel (%p395) target = $region48
        $region47: #{tpu_custom_call.1} parent=15 // pred_region
          %p398 = scmp.lt.s32.totalorder %s27, 1
          %s399 = scalar_select %p398, %s27, 1
          %s400 = smul.addr %s399, 2
          %s401 = smul.addr %s400, 8
          %s402 = scalar_lea.vmem %s7, %s401
        $region48: #{tpu_custom_call.1} parent=15 // pred_fallthru
          _
        // Predicated region
        $region49: #{tpu_custom_call.1} parent=15 // pred_check
          %p403 = pneg %p259
        $region50: #{tpu_custom_call.1} parent=15 // pred_check_branch
          %405 = sbr.rel (%p403) target = $region52
        $region51: #{tpu_custom_call.1} parent=15 // pred_region
          %p406 = scmp.lt.s32.totalorder %s27, 1
          %s407 = scalar_select %p406, %s27, 1
          %s408 = smul.addr %s407, 8
          %s409 = scalar_lea.vmem %s8, %s408
        $region52: #{tpu_custom_call.1} parent=15 // pred_fallthru
          _
        // Predicated region
        $region53: #{tpu_custom_call.1} parent=15 // pred_check
          %p410 = pneg %p285
        $region54: #{tpu_custom_call.1} parent=15 // pred_check_branch
          %412 = sbr.rel (%p410) target = $region56
        $region55: #{tpu_custom_call.1} parent=15 // pred_region
          %p413 = scmp.lt.s32.totalorder %s27, 1
          %s414 = scalar_select %p413, %s27, 1
          %s415 = scalar_lea.vmem %s9, %s414
        $region56: #{tpu_custom_call.1} parent=15 // pred_fallthru
          _
      $region16: #{tpu_custom_call.1} parent=5 // pred_fallthru
        _
      %p416 = scmp.le.s32.totalorder 1, %s19
      %p417 = scmp.lt.s32.totalorder %s19, 5
      %p418 = pnand %p416, %p417
      %p419 = pneg %p418
      // Predicated region
      $region57: #{tpu_custom_call.1} parent=5 // pred_check
        _
      $region58: #{tpu_custom_call.1} parent=5 // pred_check_branch
        %421 = sbr.rel (%p418) target = $region60
      $region59: #{tpu_custom_call.1} parent=5 // pred_region
        %s422 = ssub.s32 %s19, 1
        %s423 = smul.u32 2, %s28
        %p424 = scmp.lt.s32.totalorder %s423, 3
        %s425 = scalar_select %p424, %s423, 3
        %s426 = smul.addr %s425, 8
        %s427 = scalar_lea.vmem %s0, %s426
        %p428 = pneg %p57
        %p429 = pneg %p54
        %p430 = scmp.lt.s32.totalorder %s29, 1
        %s431 = scalar_select %p430, %s29, 1
        %s432 = smul.addr %s431, 16
        %s433 = smul.addr %s432, 4
        %s434 = scalar_lea.vmem %s1, %s433
        %p435 = pneg %p83
        %p436 = pneg %p80
        %p437 = scmp.lt.s32.totalorder %s29, 1
        %s438 = scalar_select %p437, %s29, 1
        %s439 = smul.addr %s438, 16
        %s440 = smul.addr %s439, 4
        %s441 = scalar_lea.vmem %s2, %s440
        %p442 = pneg %p109
        %p443 = pneg %p106
        %p444 = scmp.lt.s32.totalorder %s29, 1
        %s445 = scalar_select %p444, %s29, 1
        %s446 = smul.addr %s445, 16
        %s447 = smul.addr %s446, 4
        %s448 = scalar_lea.vmem %s3, %s447
        %p449 = pneg %p135
        %p450 = pneg %p132
        %p451 = scmp.lt.s32.totalorder %s29, 1
        %s452 = scalar_select %p451, %s29, 1
        %s453 = smul.addr %s452, 4
        %s454 = smul.addr %s453, 4
        %s455 = scalar_lea.vmem %s4, %s454
        %p456 = pneg %p161
        %p457 = pneg %p158
        %p458 = scmp.lt.s32.totalorder %s29, 1
        %s459 = scalar_select %p458, %s29, 1
        %s460 = smul.addr %s459, 4
        %s461 = smul.addr %s460, 4
        %s462 = scalar_lea.vmem %s5, %s461
        %p463 = pneg %p187
        %p464 = pneg %p184
        %p465 = scmp.lt.s32.totalorder %s29, 1
        %s466 = scalar_select %p465, %s29, 1
        %s467 = smul.addr %s466, 8
        %s468 = smul.addr %s467, 4
        %s469 = scalar_lea.vmem %s6, %s468
        %p470 = pneg %p213
        %p471 = pneg %p210
        %p472 = scmp.lt.s32.totalorder %s29, 1
        %s473 = scalar_select %p472, %s29, 1
        %s474 = smul.addr %s473, 2
        %s475 = smul.addr %s474, 8
        %s476 = scalar_lea.vmem %s7, %s475
        %p477 = pneg %p239
        %p478 = pneg %p236
        %p479 = scmp.lt.s32.totalorder %s29, 1
        %s480 = scalar_select %p479, %s29, 1
        %s481 = smul.addr %s480, 8
        %s482 = scalar_lea.vmem %s8, %s481
        %p483 = pneg %p265
        %p484 = pneg %p262
        %p485 = scmp.lt.s32.totalorder %s29, 1
        %s486 = scalar_select %p485, %s29, 1
        %s487 = scalar_lea.vmem %s9, %s486
        %p488 = pneg %p291
        %p489 = pneg %p288
        %p490 = pneg %p319
        %p491 = pneg %p316
        %s492 = sand.u32 %s306, 1
        %s493 = scalar_lea.sflag [#allocation4], %s492
        %s494 = sand.u32 %s306, 1
        %s495 = smul.addr %s494, 16
        %s496 = scalar_lea.vmem [#allocation3], %s495
        %s497 = smul.u32 2, %s28
        %p498 = scmp.lt.s32.totalorder %s497, 3
        %s499 = scalar_select %p498, %s497, 3
        %s500 = smul.addr %s499, 8
        %s501 = scalar_lea.vmem %s0, %s500
        %s502 = smul.u32 2, %s28
        %p503 = scmp.lt.s32.totalorder %s29, 1
        %s504 = scalar_select %p503, %s29, 1
        %s505 = smul.addr %s504, 16
        %s506 = smul.addr %s505, 4
        %s507 = scalar_lea.vmem %s1, %s506
        %p508 = scmp.lt.s32.totalorder %s29, 1
        %s509 = scalar_select %p508, %s29, 1
        %s510 = smul.addr %s509, 16
        %s511 = smul.addr %s510, 4
        %s512 = scalar_lea.vmem %s2, %s511
        %p513 = scmp.lt.s32.totalorder %s29, 1
        %s514 = scalar_select %p513, %s29, 1
        %s515 = smul.addr %s514, 16
        %s516 = smul.addr %s515, 4
        %s517 = scalar_lea.vmem %s3, %s516
        %p518 = scmp.lt.s32.totalorder %s29, 1
        %s519 = scalar_select %p518, %s29, 1
        %s520 = smul.addr %s519, 4
        %s521 = smul.addr %s520, 4
        %s522 = scalar_lea.vmem %s4, %s521
        %p523 = scmp.lt.s32.totalorder %s29, 1
        %s524 = scalar_select %p523, %s29, 1
        %s525 = smul.addr %s524, 4
        %s526 = smul.addr %s525, 4
        %s527 = scalar_lea.vmem %s5, %s526
        %p528 = scmp.lt.s32.totalorder %s29, 1
        %s529 = scalar_select %p528, %s29, 1
        %s530 = smul.addr %s529, 8
        %s531 = smul.addr %s530, 4
        %s532 = scalar_lea.vmem %s6, %s531
        %p533 = scmp.lt.s32.totalorder %s29, 1
        %s534 = scalar_select %p533, %s29, 1
        %s535 = smul.addr %s534, 2
        %s536 = smul.addr %s535, 8
        %s537 = scalar_lea.vmem %s7, %s536
        %p538 = scmp.lt.s32.totalorder %s29, 1
        %s539 = scalar_select %p538, %s29, 1
        %s540 = smul.addr %s539, 8
        %s541 = scalar_lea.vmem %s8, %s540
        %p542 = scmp.lt.s32.totalorder %s29, 1
        %s543 = scalar_select %p542, %s29, 1
        %s544 = scalar_lea.vmem %s9, %s543
        %s545 = smul.u32 2, %s28
        %p547 = scmp.eq.s32.totalorder %s29, 0
        // Predicated region
        $region61: #{tpu_custom_call.1} parent=59 // pred_check
          %p548 = pneg %p547
        $region62: #{tpu_custom_call.1} parent=59 // pred_check_branch
          %550 = sbr.rel (%p548) target = $region64
        $region63: #{tpu_custom_call.1} parent=59 // pred_region
          %v551 = vld [vmem:[%s501] sm:$0xff]
          %v552 = vld [vmem:[%s501 + $0x8] sm:$0xff]
          %vm553 = vcmask 261120
          %554 = vst.msk [vmem:[#allocation2] sm:$0xff] %vm553, %v551
          %555 = vst.msk [vmem:[#allocation2 + $0x8] sm:$0xff] %vm553, %v552
        $region64: #{tpu_custom_call.1} parent=59 // pred_fallthru
          _
        %v556 = vld [vmem:[#allocation2] sm:$0xff]
        %v557 = vld [vmem:[#allocation2 + $0x8] sm:$0xff]
        %v558 = vld [vmem:[%s541] sm:$0x3f]
        %v559 = vld [vmem:[%s544] sm:$0x1]
        %v560 = vld [vmem:[%s537] sm:$0xff]
        %v561 = vld [vmem:[%s537 + $0x8] sm:$0xf]
        %v562 = vpack.c.bf16 %v557, %v556
        %v563 = vld [vmem:[%s507] sm:$0xf]
        %v564 = vld [vmem:[%s507 + $0x4] sm:$0xf]
        %v565 = vld [vmem:[%s507 + $0x8] sm:$0xf]
        %v566 = vld [vmem:[%s507 + $0xc] sm:$0xf]
        %v567 = vperm.slane %v560, 0
        %v572 = vunpack.c.l.b16 %v563
        %v573 = vunpack.c.l.b16 %v564
        %v574 = vunpack.c.l.b16 %v565
        %v575 = vunpack.c.l.b16 %v566
        %v576 = vpack.c.b16 %v573, %v572
        %v577 = vpack.c.b16 %v575, %v574
        %vm580 = vcmask 261120
        %v582 = vsel %vm580, %v562, 0
        %584 = vmatpush.bf16.msra.mxu0 0
        %585 = vmatpush.bf16.msra.mxu0 0
        %586 = vmatpush.bf16.msra.mxu0 0
        %587 = vmatpush.bf16.msra.mxu0 0
        %588 = vmatpush.bf16.msra.mxu0 0
        %589 = vmatpush.bf16.msra.mxu0 0
        %590 = vmatpush.bf16.msra.mxu0 %v577
        %591 = vmatpush.bf16.msra.mxu0 %v576
        %592 = vmatmul.bf16.gmra.mxu0 %v582
        %v593 = vpop.f32.mrf.mxu0
        %v594 = vadd.f32 %v567, %v593
        %v595 = vpop.f32.mrf.mxu0
        %v596 = vadd.f32 %v567, %v595
        %597 = vdwg.mxu0
        %v598 = vld [vmem:[%s512] sm:$0xf]
        %v599 = vld [vmem:[%s512 + $0x4] sm:$0xf]
        %v600 = vld [vmem:[%s512 + $0x8] sm:$0xf]
        %v601 = vld [vmem:[%s512 + $0xc] sm:$0xf]
        %v602 = vperm.slane %v560, 4
        %v607 = vunpack.c.l.b16 %v598
        %v608 = vunpack.c.l.b16 %v599
        %v609 = vunpack.c.l.b16 %v600
        %v610 = vunpack.c.l.b16 %v601
        %v611 = vpack.c.b16 %v608, %v607
        %v612 = vpack.c.b16 %v610, %v609
        %615 = vmatpush.bf16.msra.mxu0 0
        %616 = vmatpush.bf16.msra.mxu0 0
        %617 = vmatpush.bf16.msra.mxu0 0
        %618 = vmatpush.bf16.msra.mxu0 0
        %619 = vmatpush.bf16.msra.mxu0 0
        %620 = vmatpush.bf16.msra.mxu0 0
        %621 = vmatpush.bf16.msra.mxu0 %v612
        %622 = vmatpush.bf16.msra.mxu0 %v611
        %623 = vmatmul.bf16.gmra.mxu0 %v582
        %v624 = vpop.f32.mrf.mxu0
        %v625 = vadd.f32 %v602, %v624
        %v626 = vpop.f32.mrf.mxu0
        %v627 = vadd.f32 %v602, %v626
        %628 = vdwg.mxu0
        %v629 = vld [vmem:[%s517] sm:$0xf]
        %v630 = vld [vmem:[%s517 + $0x4] sm:$0xf]
        %v631 = vld [vmem:[%s517 + $0x8] sm:$0xf]
        %v632 = vld [vmem:[%s517 + $0xc] sm:$0xf]
        %v633 = vperm.slane %v561, 0
        %v638 = vunpack.c.l.b16 %v629
        %v639 = vunpack.c.l.b16 %v630
        %v640 = vunpack.c.l.b16 %v631
        %v641 = vunpack.c.l.b16 %v632
        %v642 = vpack.c.b16 %v639, %v638
        %v643 = vpack.c.b16 %v641, %v640
        %646 = vmatpush.bf16.msra.mxu0 0
        %647 = vmatpush.bf16.msra.mxu0 0
        %648 = vmatpush.bf16.msra.mxu0 0
        %649 = vmatpush.bf16.msra.mxu0 0
        %650 = vmatpush.bf16.msra.mxu0 0
        %651 = vmatpush.bf16.msra.mxu0 0
        %652 = vmatpush.bf16.msra.mxu0 %v643
        %653 = vmatpush.bf16.msra.mxu0 %v642
        %654 = vmatmul.bf16.gmra.mxu0 %v582
        %v655 = vpop.f32.mrf.mxu0
        %v656 = vadd.f32 %v633, %v655
        %v657 = vpop.f32.mrf.mxu0
        %v658 = vadd.f32 %v633, %v657
        %659 = vdwg.mxu0
        %v660 = vpack.c.bf16 %v594, %v594
        %v661 = vpack.c.bf16 %v625, %v625
        %v662 = vpack.c.bf16 %v656, %v656
        %vm663 = vcmask 64512
        %v665 = vsel %vm663, %v660, 0
        %v668 = vsel %vm663, %v661, 0
        %670 = vmatpush.bf16.xpose.msra.mxu0 0
        %671 = vmatpush.bf16.xpose.msra.mxu0 0
        %672 = vmatpush.bf16.xpose.msra.mxu0 0
        %673 = vmatpush.bf16.xpose.msra.mxu0 0
        %674 = vmatpush.bf16.xpose.msra.mxu0 0
        %675 = vmatpush.bf16.xpose.msra.mxu0 0
        %676 = vmatpush.bf16.xpose.msra.mxu0 0
        %677 = vmatpush.bf16.xpose.msra.mxu0 %v668
        %678 = vmatmul.bf16.gmra.mxu0 %v665
        %v679 = vpop.f32.mrf.mxu0
        %v680 = vadd.f32 0.0, %v679
        %v681 = vpop.f32.mrf.mxu0
        %682 = vdwg.mxu0
        %v683 = vsel %vm663, %v680, -inf
        %684 = vmax.xlane.f32.xlu0 %v683
        %v685 = vpop.xlane.xlu0 %684
        %v686 = vsub.f32 %v680, %v685
        %v687 = vmul.f32 %v686, 1.442695
        %v688 = vpow.pop %v687
        %v689 = vsel %vm663, %v688, 0.0
        %690 = vadd.xlane.f32.xlu0 %v689
        %v691 = vpop.xlane.xlu0 %690
        %v692 = vrcp.pop %v691
        %v693 = vmul.f32 %v688, %v692
        %v694 = vpack.c.bf16 %v693, %v693
        %v696 = vsel %vm663, %v694, 0
        %vm698 = vcmask 1043456
        %v700 = vsel %vm698, %v662, 0
        %702 = vmatpush.bf16.msra.mxu0 0
        %703 = vmatpush.bf16.msra.mxu0 0
        %704 = vmatpush.bf16.msra.mxu0 0
        %705 = vmatpush.bf16.msra.mxu0 0
        %706 = vmatpush.bf16.msra.mxu0 0
        %707 = vmatpush.bf16.msra.mxu0 0
        %708 = vmatpush.bf16.msra.mxu0 0
        %709 = vmatpush.bf16.msra.mxu0 %v700
        %710 = vmatmul.bf16.gmra.mxu0 %v696
        %v711 = vpop.f32.mrf.mxu0
        %v712 = vadd.f32 0.0, %v711
        %v713 = vpop.f32.mrf.mxu0
        %714 = vdwg.mxu0
        %v715 = vpack.c.bf16 %v596, %v596
        %v716 = vpack.c.bf16 %v627, %v627
        %v717 = vpack.c.bf16 %v658, %v658
        %v719 = vsel %vm663, %v715, 0
        %v722 = vsel %vm663, %v716, 0
        %724 = vmatpush.bf16.xpose.msra.mxu0 0
        %725 = vmatpush.bf16.xpose.msra.mxu0 0
        %726 = vmatpush.bf16.xpose.msra.mxu0 0
        %727 = vmatpush.bf16.xpose.msra.mxu0 0
        %728 = vmatpush.bf16.xpose.msra.mxu0 0
        %729 = vmatpush.bf16.xpose.msra.mxu0 0
        %730 = vmatpush.bf16.xpose.msra.mxu0 0
        %731 = vmatpush.bf16.xpose.msra.mxu0 %v722
        %732 = vmatmul.bf16.gmra.mxu0 %v719
        %v733 = vpop.f32.mrf.mxu0
        %v734 = vadd.f32 0.0, %v733
        %v735 = vpop.f32.mrf.mxu0
        %736 = vdwg.mxu0
        %v737 = vsel %vm663, %v734, -inf
        %738 = vmax.xlane.f32.xlu0 %v737
        %v739 = vpop.xlane.xlu0 %738
        %v740 = vsub.f32 %v734, %v739
        %v741 = vmul.f32 %v740, 1.442695
        %v742 = vpow.pop %v741
        %v743 = vsel %vm663, %v742, 0.0
        %744 = vadd.xlane.f32.xlu0 %v743
        %v745 = vpop.xlane.xlu0 %744
        %v746 = vrcp.pop %v745
        %v747 = vmul.f32 %v742, %v746
        %v748 = vpack.c.bf16 %v747, %v747
        %v750 = vsel %vm663, %v748, 0
        %v753 = vsel %vm698, %v717, 0
        %755 = vmatpush.bf16.msra.mxu0 0
        %756 = vmatpush.bf16.msra.mxu0 0
        %757 = vmatpush.bf16.msra.mxu0 0
        %758 = vmatpush.bf16.msra.mxu0 0
        %759 = vmatpush.bf16.msra.mxu0 0
        %760 = vmatpush.bf16.msra.mxu0 0
        %761 = vmatpush.bf16.msra.mxu0 0
        %762 = vmatpush.bf16.msra.mxu0 %v753
        %763 = vmatmul.bf16.gmra.mxu0 %v750
        %v764 = vpop.f32.mrf.mxu0
        %v765 = vadd.f32 0.0, %v764
        %v766 = vpop.f32.mrf.mxu0
        %767 = vdwg.mxu0
        %v768 = vpack.c.bf16 %v765, %v712
        %v769 = vld [vmem:[%s522] sm:$0xf]
        %s770 = scalar_lea.vmem %s507, 16
        %v771 = vld [vmem:[%s770] sm:$0xf]
        %v772 = vld [vmem:[%s770 + $0x4] sm:$0xf]
        %v773 = vld [vmem:[%s770 + $0x8] sm:$0xf]
        %v774 = vld [vmem:[%s770 + $0xc] sm:$0xf]
        %v775 = vperm.slane %v560, 1
        %v780 = vunpack.c.l.b16 %v771
        %v781 = vunpack.c.l.b16 %v772
        %v782 = vunpack.c.l.b16 %v773
        %v783 = vunpack.c.l.b16 %v774
        %v784 = vpack.c.b16 %v781, %v780
        %v785 = vpack.c.b16 %v783, %v782
        %788 = vmatpush.bf16.msra.mxu0 0
        %789 = vmatpush.bf16.msra.mxu0 0
        %790 = vmatpush.bf16.msra.mxu0 0
        %791 = vmatpush.bf16.msra.mxu0 0
        %792 = vmatpush.bf16.msra.mxu0 0
        %793 = vmatpush.bf16.msra.mxu0 0
        %794 = vmatpush.bf16.msra.mxu0 %v785
        %795 = vmatpush.bf16.msra.mxu0 %v784
        %796 = vmatmul.bf16.gmra.mxu0 %v582
        %v797 = vpop.f32.mrf.mxu0
        %v798 = vadd.f32 %v775, %v797
        %v799 = vpop.f32.mrf.mxu0
        %v800 = vadd.f32 %v775, %v799
        %801 = vdwg.mxu0
        %s802 = scalar_lea.vmem %s512, 16
        %v803 = vld [vmem:[%s802] sm:$0xf]
        %v804 = vld [vmem:[%s802 + $0x4] sm:$0xf]
        %v805 = vld [vmem:[%s802 + $0x8] sm:$0xf]
        %v806 = vld [vmem:[%s802 + $0xc] sm:$0xf]
        %v807 = vperm.slane %v560, 5
        %v812 = vunpack.c.l.b16 %v803
        %v813 = vunpack.c.l.b16 %v804
        %v814 = vunpack.c.l.b16 %v805
        %v815 = vunpack.c.l.b16 %v806
        %v816 = vpack.c.b16 %v813, %v812
        %v817 = vpack.c.b16 %v815, %v814
        %820 = vmatpush.bf16.msra.mxu0 0
        %821 = vmatpush.bf16.msra.mxu0 0
        %822 = vmatpush.bf16.msra.mxu0 0
        %823 = vmatpush.bf16.msra.mxu0 0
        %824 = vmatpush.bf16.msra.mxu0 0
        %825 = vmatpush.bf16.msra.mxu0 0
        %826 = vmatpush.bf16.msra.mxu0 %v817
        %827 = vmatpush.bf16.msra.mxu0 %v816
        %828 = vmatmul.bf16.gmra.mxu0 %v582
        %v829 = vpop.f32.mrf.mxu0
        %v830 = vadd.f32 %v807, %v829
        %v831 = vpop.f32.mrf.mxu0
        %v832 = vadd.f32 %v807, %v831
        %833 = vdwg.mxu0
        %s834 = scalar_lea.vmem %s517, 16
        %v835 = vld [vmem:[%s834] sm:$0xf]
        %v836 = vld [vmem:[%s834 + $0x4] sm:$0xf]
        %v837 = vld [vmem:[%s834 + $0x8] sm:$0xf]
        %v838 = vld [vmem:[%s834 + $0xc] sm:$0xf]
        %v839 = vperm.slane %v561, 1
        %v844 = vunpack.c.l.b16 %v835
        %v845 = vunpack.c.l.b16 %v836
        %v846 = vunpack.c.l.b16 %v837
        %v847 = vunpack.c.l.b16 %v838
        %v848 = vpack.c.b16 %v845, %v844
        %v849 = vpack.c.b16 %v847, %v846
        %852 = vmatpush.bf16.msra.mxu0 0
        %853 = vmatpush.bf16.msra.mxu0 0
        %854 = vmatpush.bf16.msra.mxu0 0
        %855 = vmatpush.bf16.msra.mxu0 0
        %856 = vmatpush.bf16.msra.mxu0 0
        %857 = vmatpush.bf16.msra.mxu0 0
        %858 = vmatpush.bf16.msra.mxu0 %v849
        %859 = vmatpush.bf16.msra.mxu0 %v848
        %860 = vmatmul.bf16.gmra.mxu0 %v582
        %v861 = vpop.f32.mrf.mxu0
        %v862 = vadd.f32 %v839, %v861
        %v863 = vpop.f32.mrf.mxu0
        %v864 = vadd.f32 %v839, %v863
        %865 = vdwg.mxu0
        %v866 = vpack.c.bf16 %v798, %v798
        %v867 = vpack.c.bf16 %v830, %v830
        %v868 = vpack.c.bf16 %v862, %v862
        %v870 = vsel %vm663, %v866, 0
        %v873 = vsel %vm663, %v867, 0
        %875 = vmatpush.bf16.xpose.msra.mxu0 0
        %876 = vmatpush.bf16.xpose.msra.mxu0 0
        %877 = vmatpush.bf16.xpose.msra.mxu0 0
        %878 = vmatpush.bf16.xpose.msra.mxu0 0
        %879 = vmatpush.bf16.xpose.msra.mxu0 0
        %880 = vmatpush.bf16.xpose.msra.mxu0 0
        %881 = vmatpush.bf16.xpose.msra.mxu0 0
        %882 = vmatpush.bf16.xpose.msra.mxu0 %v873
        %883 = vmatmul.bf16.gmra.mxu0 %v870
        %v884 = vpop.f32.mrf.mxu0
        %v885 = vadd.f32 0.0, %v884
        %v886 = vpop.f32.mrf.mxu0
        %887 = vdwg.mxu0
        %v888 = vsel %vm663, %v885, -inf
        %889 = vmax.xlane.f32.xlu0 %v888
        %v890 = vpop.xlane.xlu0 %889
        %v891 = vsub.f32 %v885, %v890
        %v892 = vmul.f32 %v891, 1.442695
        %v893 = vpow.pop %v892
        %v894 = vsel %vm663, %v893, 0.0
        %895 = vadd.xlane.f32.xlu0 %v894
        %v896 = vpop.xlane.xlu0 %895
        %v897 = vrcp.pop %v896
        %v898 = vmul.f32 %v893, %v897
        %v899 = vpack.c.bf16 %v898, %v898
        %v901 = vsel %vm663, %v899, 0
        %v904 = vsel %vm698, %v868, 0
        %906 = vmatpush.bf16.msra.mxu0 0
        %907 = vmatpush.bf16.msra.mxu0 0
        %908 = vmatpush.bf16.msra.mxu0 0
        %909 = vmatpush.bf16.msra.mxu0 0
        %910 = vmatpush.bf16.msra.mxu0 0
        %911 = vmatpush.bf16.msra.mxu0 0
        %912 = vmatpush.bf16.msra.mxu0 0
        %913 = vmatpush.bf16.msra.mxu0 %v904
        %914 = vmatmul.bf16.gmra.mxu0 %v901
        %v915 = vpop.f32.mrf.mxu0
        %v916 = vadd.f32 0.0, %v915
        %v917 = vpop.f32.mrf.mxu0
        %918 = vdwg.mxu0
        %v919 = vpack.c.bf16 %v800, %v800
        %v920 = vpack.c.bf16 %v832, %v832
        %v921 = vpack.c.bf16 %v864, %v864
        %v923 = vsel %vm663, %v919, 0
        %v926 = vsel %vm663, %v920, 0
        %928 = vmatpush.bf16.xpose.msra.mxu0 0
        %929 = vmatpush.bf16.xpose.msra.mxu0 0
        %930 = vmatpush.bf16.xpose.msra.mxu0 0
        %931 = vmatpush.bf16.xpose.msra.mxu0 0
        %932 = vmatpush.bf16.xpose.msra.mxu0 0
        %933 = vmatpush.bf16.xpose.msra.mxu0 0
        %934 = vmatpush.bf16.xpose.msra.mxu0 0
        %935 = vmatpush.bf16.xpose.msra.mxu0 %v926
        %936 = vmatmul.bf16.gmra.mxu0 %v923
        %v937 = vpop.f32.mrf.mxu0
        %v938 = vadd.f32 0.0, %v937
        %v939 = vpop.f32.mrf.mxu0
        %940 = vdwg.mxu0
        %v941 = vsel %vm663, %v938, -inf
        %942 = vmax.xlane.f32.xlu0 %v941
        %v943 = vpop.xlane.xlu0 %942
        %v944 = vsub.f32 %v938, %v943
        %v945 = vmul.f32 %v944, 1.442695
        %v946 = vpow.pop %v945
        %v947 = vsel %vm663, %v946, 0.0
        %948 = vadd.xlane.f32.xlu0 %v947
        %v949 = vpop.xlane.xlu0 %948
        %v950 = vrcp.pop %v949
        %v951 = vmul.f32 %v946, %v950
        %v952 = vpack.c.bf16 %v951, %v951
        %v954 = vsel %vm663, %v952, 0
        %v957 = vsel %vm698, %v921, 0
        %959 = vmatpush.bf16.msra.mxu0 0
        %960 = vmatpush.bf16.msra.mxu0 0
        %961 = vmatpush.bf16.msra.mxu0 0
        %962 = vmatpush.bf16.msra.mxu0 0
        %963 = vmatpush.bf16.msra.mxu0 0
        %964 = vmatpush.bf16.msra.mxu0 0
        %965 = vmatpush.bf16.msra.mxu0 0
        %966 = vmatpush.bf16.msra.mxu0 %v957
        %967 = vmatmul.bf16.gmra.mxu0 %v954
        %v968 = vpop.f32.mrf.mxu0
        %v969 = vadd.f32 0.0, %v968
        %v970 = vpop.f32.mrf.mxu0
        %971 = vdwg.mxu0
        %v972 = vpack.c.bf16 %v969, %v916
        %s973 = scalar_lea.vmem %s522, 4
        %v974 = vld [vmem:[%s973] sm:$0xf]
        %v976 = vsel %vm663, %v972, 0
        %v979 = vsel %vm698, %v974, 0
        %981 = vmatpush.bf16.msra.mxu0 0
        %982 = vmatpush.bf16.msra.mxu0 0
        %983 = vmatpush.bf16.msra.mxu0 0
        %984 = vmatpush.bf16.msra.mxu0 0
        %985 = vmatpush.bf16.msra.mxu0 0
        %986 = vmatpush.bf16.msra.mxu0 0
        %987 = vmatpush.bf16.msra.mxu0 0
        %988 = vmatpush.bf16.msra.mxu0 %v979
        %989 = vmatmul.bf16.gmra.mxu0 %v976
        %v990 = vpop.f32.mrf.mxu0
        %v991 = vadd.f32 0.0, %v990
        %v992 = vpop.f32.mrf.mxu0
        %v993 = vadd.f32 0.0, %v992
        %994 = vdwg.mxu0
        %v996 = vsel %vm663, %v768, 0
        %v999 = vsel %vm698, %v769, 0
        %1001 = vmatpush.bf16.msra.mxu0 0
        %1002 = vmatpush.bf16.msra.mxu0 0
        %1003 = vmatpush.bf16.msra.mxu0 0
        %1004 = vmatpush.bf16.msra.mxu0 0
        %1005 = vmatpush.bf16.msra.mxu0 0
        %1006 = vmatpush.bf16.msra.mxu0 0
        %1007 = vmatpush.bf16.msra.mxu0 0
        %1008 = vmatpush.bf16.msra.mxu0 %v999
        %1009 = vmatmul.bf16.gmra.mxu0 %v996
        %v1010 = vpop.f32.mrf.mxu0
        %v1011 = vadd.f32 %v991, %v1010
        %v1012 = vpop.f32.mrf.mxu0
        %v1013 = vadd.f32 %v993, %v1012
        %1014 = vdwg.mxu0
        %s1015 = scalar_lea.vmem %s507, 32
        %v1016 = vld [vmem:[%s1015] sm:$0xf]
        %v1017 = vld [vmem:[%s1015 + $0x4] sm:$0xf]
        %v1018 = vld [vmem:[%s1015 + $0x8] sm:$0xf]
        %v1019 = vld [vmem:[%s1015 + $0xc] sm:$0xf]
        %v1020 = vperm.slane %v560, 2
        %v1025 = vunpack.c.l.b16 %v1016
        %v1026 = vunpack.c.l.b16 %v1017
        %v1027 = vunpack.c.l.b16 %v1018
        %v1028 = vunpack.c.l.b16 %v1019
        %v1029 = vpack.c.b16 %v1026, %v1025
        %v1030 = vpack.c.b16 %v1028, %v1027
        %1033 = vmatpush.bf16.msra.mxu0 0
        %1034 = vmatpush.bf16.msra.mxu0 0
        %1035 = vmatpush.bf16.msra.mxu0 0
        %1036 = vmatpush.bf16.msra.mxu0 0
        %1037 = vmatpush.bf16.msra.mxu0 0
        %1038 = vmatpush.bf16.msra.mxu0 0
        %1039 = vmatpush.bf16.msra.mxu0 %v1030
        %1040 = vmatpush.bf16.msra.mxu0 %v1029
        %1041 = vmatmul.bf16.gmra.mxu0 %v582
        %v1042 = vpop.f32.mrf.mxu0
        %v1043 = vadd.f32 %v1020, %v1042
        %v1044 = vpop.f32.mrf.mxu0
        %v1045 = vadd.f32 %v1020, %v1044
        %1046 = vdwg.mxu0
        %s1047 = scalar_lea.vmem %s512, 32
        %v1048 = vld [vmem:[%s1047] sm:$0xf]
        %v1049 = vld [vmem:[%s1047 + $0x4] sm:$0xf]
        %v1050 = vld [vmem:[%s1047 + $0x8] sm:$0xf]
        %v1051 = vld [vmem:[%s1047 + $0xc] sm:$0xf]
        %v1052 = vperm.slane %v560, 6
        %v1057 = vunpack.c.l.b16 %v1048
        %v1058 = vunpack.c.l.b16 %v1049
        %v1059 = vunpack.c.l.b16 %v1050
        %v1060 = vunpack.c.l.b16 %v1051
        %v1061 = vpack.c.b16 %v1058, %v1057
        %v1062 = vpack.c.b16 %v1060, %v1059
        %1065 = vmatpush.bf16.msra.mxu0 0
        %1066 = vmatpush.bf16.msra.mxu0 0
        %1067 = vmatpush.bf16.msra.mxu0 0
        %1068 = vmatpush.bf16.msra.mxu0 0
        %1069 = vmatpush.bf16.msra.mxu0 0
        %1070 = vmatpush.bf16.msra.mxu0 0
        %1071 = vmatpush.bf16.msra.mxu0 %v1062
        %1072 = vmatpush.bf16.msra.mxu0 %v1061
        %1073 = vmatmul.bf16.gmra.mxu0 %v582
        %v1074 = vpop.f32.mrf.mxu0
        %v1075 = vadd.f32 %v1052, %v1074
        %v1076 = vpop.f32.mrf.mxu0
        %v1077 = vadd.f32 %v1052, %v1076
        %1078 = vdwg.mxu0
        %s1079 = scalar_lea.vmem %s517, 32
        %v1080 = vld [vmem:[%s1079] sm:$0xf]
        %v1081 = vld [vmem:[%s1079 + $0x4] sm:$0xf]
        %v1082 = vld [vmem:[%s1079 + $0x8] sm:$0xf]
        %v1083 = vld [vmem:[%s1079 + $0xc] sm:$0xf]
        %v1084 = vperm.slane %v561, 2
        %v1089 = vunpack.c.l.b16 %v1080
        %v1090 = vunpack.c.l.b16 %v1081
        %v1091 = vunpack.c.l.b16 %v1082
        %v1092 = vunpack.c.l.b16 %v1083
        %v1093 = vpack.c.b16 %v1090, %v1089
        %v1094 = vpack.c.b16 %v1092, %v1091
        %1097 = vmatpush.bf16.msra.mxu0 0
        %1098 = vmatpush.bf16.msra.mxu0 0
        %1099 = vmatpush.bf16.msra.mxu0 0
        %1100 = vmatpush.bf16.msra.mxu0 0
        %1101 = vmatpush.bf16.msra.mxu0 0
        %1102 = vmatpush.bf16.msra.mxu0 0
        %1103 = vmatpush.bf16.msra.mxu0 %v1094
        %1104 = vmatpush.bf16.msra.mxu0 %v1093
        %1105 = vmatmul.bf16.gmra.mxu0 %v582
        %v1106 = vpop.f32.mrf.mxu0
        %v1107 = vadd.f32 %v1084, %v1106
        %v1108 = vpop.f32.mrf.mxu0
        %v1109 = vadd.f32 %v1084, %v1108
        %1110 = vdwg.mxu0
        %v1111 = vpack.c.bf16 %v1043, %v1043
        %v1112 = vpack.c.bf16 %v1075, %v1075
        %v1113 = vpack.c.bf16 %v1107, %v1107
        %v1115 = vsel %vm663, %v1111, 0
        %v1118 = vsel %vm663, %v1112, 0
        %1120 = vmatpush.bf16.xpose.msra.mxu0 0
        %1121 = vmatpush.bf16.xpose.msra.mxu0 0
        %1122 = vmatpush.bf16.xpose.msra.mxu0 0
        %1123 = vmatpush.bf16.xpose.msra.mxu0 0
        %1124 = vmatpush.bf16.xpose.msra.mxu0 0
        %1125 = vmatpush.bf16.xpose.msra.mxu0 0
        %1126 = vmatpush.bf16.xpose.msra.mxu0 0
        %1127 = vmatpush.bf16.xpose.msra.mxu0 %v1118
        %1128 = vmatmul.bf16.gmra.mxu0 %v1115
        %v1129 = vpop.f32.mrf.mxu0
        %v1130 = vadd.f32 0.0, %v1129
        %v1131 = vpop.f32.mrf.mxu0
        %1132 = vdwg.mxu0
        %v1133 = vsel %vm663, %v1130, -inf
        %1134 = vmax.xlane.f32.xlu0 %v1133
        %v1135 = vpop.xlane.xlu0 %1134
        %v1136 = vsub.f32 %v1130, %v1135
        %v1137 = vmul.f32 %v1136, 1.442695
        %v1138 = vpow.pop %v1137
        %v1139 = vsel %vm663, %v1138, 0.0
        %1140 = vadd.xlane.f32.xlu0 %v1139
        %v1141 = vpop.xlane.xlu0 %1140
        %v1142 = vrcp.pop %v1141
        %v1143 = vmul.f32 %v1138, %v1142
        %v1144 = vpack.c.bf16 %v1143, %v1143
        %v1146 = vsel %vm663, %v1144, 0
        %v1149 = vsel %vm698, %v1113, 0
        %1151 = vmatpush.bf16.msra.mxu0 0
        %1152 = vmatpush.bf16.msra.mxu0 0
        %1153 = vmatpush.bf16.msra.mxu0 0
        %1154 = vmatpush.bf16.msra.mxu0 0
        %1155 = vmatpush.bf16.msra.mxu0 0
        %1156 = vmatpush.bf16.msra.mxu0 0
        %1157 = vmatpush.bf16.msra.mxu0 0
        %1158 = vmatpush.bf16.msra.mxu0 %v1149
        %1159 = vmatmul.bf16.gmra.mxu0 %v1146
        %v1160 = vpop.f32.mrf.mxu0
        %v1161 = vadd.f32 0.0, %v1160
        %v1162 = vpop.f32.mrf.mxu0
        %1163 = vdwg.mxu0
        %v1164 = vpack.c.bf16 %v1045, %v1045
        %v1165 = vpack.c.bf16 %v1077, %v1077
        %v1166 = vpack.c.bf16 %v1109, %v1109
        %v1168 = vsel %vm663, %v1164, 0
        %v1171 = vsel %vm663, %v1165, 0
        %1173 = vmatpush.bf16.xpose.msra.mxu0 0
        %1174 = vmatpush.bf16.xpose.msra.mxu0 0
        %1175 = vmatpush.bf16.xpose.msra.mxu0 0
        %1176 = vmatpush.bf16.xpose.msra.mxu0 0
        %1177 = vmatpush.bf16.xpose.msra.mxu0 0
        %1178 = vmatpush.bf16.xpose.msra.mxu0 0
        %1179 = vmatpush.bf16.xpose.msra.mxu0 0
        %1180 = vmatpush.bf16.xpose.msra.mxu0 %v1171
        %1181 = vmatmul.bf16.gmra.mxu0 %v1168
        %v1182 = vpop.f32.mrf.mxu0
        %v1183 = vadd.f32 0.0, %v1182
        %v1184 = vpop.f32.mrf.mxu0
        %1185 = vdwg.mxu0
        %v1186 = vsel %vm663, %v1183, -inf
        %1187 = vmax.xlane.f32.xlu0 %v1186
        %v1188 = vpop.xlane.xlu0 %1187
        %v1189 = vsub.f32 %v1183, %v1188
        %v1190 = vmul.f32 %v1189, 1.442695
        %v1191 = vpow.pop %v1190
        %v1192 = vsel %vm663, %v1191, 0.0
        %1193 = vadd.xlane.f32.xlu0 %v1192
        %v1194 = vpop.xlane.xlu0 %1193
        %v1195 = vrcp.pop %v1194
        %v1196 = vmul.f32 %v1191, %v1195
        %v1197 = vpack.c.bf16 %v1196, %v1196
        %v1199 = vsel %vm663, %v1197, 0
        %v1202 = vsel %vm698, %v1166, 0
        %1204 = vmatpush.bf16.msra.mxu0 0
        %1205 = vmatpush.bf16.msra.mxu0 0
        %1206 = vmatpush.bf16.msra.mxu0 0
        %1207 = vmatpush.bf16.msra.mxu0 0
        %1208 = vmatpush.bf16.msra.mxu0 0
        %1209 = vmatpush.bf16.msra.mxu0 0
        %1210 = vmatpush.bf16.msra.mxu0 0
        %1211 = vmatpush.bf16.msra.mxu0 %v1202
        %1212 = vmatmul.bf16.gmra.mxu0 %v1199
        %v1213 = vpop.f32.mrf.mxu0
        %v1214 = vadd.f32 0.0, %v1213
        %v1215 = vpop.f32.mrf.mxu0
        %1216 = vdwg.mxu0
        %v1217 = vpack.c.bf16 %v1214, %v1161
        %s1218 = scalar_lea.vmem %s522, 8
        %v1219 = vld [vmem:[%s1218] sm:$0xf]
        %v1221 = vsel %vm663, %v1217, 0
        %v1224 = vsel %vm698, %v1219, 0
        %1226 = vmatpush.bf16.msra.mxu0 0
        %1227 = vmatpush.bf16.msra.mxu0 0
        %1228 = vmatpush.bf16.msra.mxu0 0
        %1229 = vmatpush.bf16.msra.mxu0 0
        %1230 = vmatpush.bf16.msra.mxu0 0
        %1231 = vmatpush.bf16.msra.mxu0 0
        %1232 = vmatpush.bf16.msra.mxu0 0
        %1233 = vmatpush.bf16.msra.mxu0 %v1224
        %1234 = vmatmul.bf16.gmra.mxu0 %v1221
        %v1235 = vpop.f32.mrf.mxu0
        %v1236 = vadd.f32 0.0, %v1235
        %v1237 = vpop.f32.mrf.mxu0
        %v1238 = vadd.f32 0.0, %v1237
        %1239 = vdwg.mxu0
        %v1240 = vadd.f32 %v1011, %v1236
        %v1241 = vadd.f32 %v1013, %v1238
        %s1242 = scalar_lea.vmem %s507, 48
        %v1243 = vld [vmem:[%s1242] sm:$0xf]
        %v1244 = vld [vmem:[%s1242 + $0x4] sm:$0xf]
        %v1245 = vld [vmem:[%s1242 + $0x8] sm:$0xf]
        %v1246 = vld [vmem:[%s1242 + $0xc] sm:$0xf]
        %v1247 = vperm.slane %v560, 3
        %v1252 = vunpack.c.l.b16 %v1243
        %v1253 = vunpack.c.l.b16 %v1244
        %v1254 = vunpack.c.l.b16 %v1245
        %v1255 = vunpack.c.l.b16 %v1246
        %v1256 = vpack.c.b16 %v1253, %v1252
        %v1257 = vpack.c.b16 %v1255, %v1254
        %1260 = vmatpush.bf16.msra.mxu0 0
        %1261 = vmatpush.bf16.msra.mxu0 0
        %1262 = vmatpush.bf16.msra.mxu0 0
        %1263 = vmatpush.bf16.msra.mxu0 0
        %1264 = vmatpush.bf16.msra.mxu0 0
        %1265 = vmatpush.bf16.msra.mxu0 0
        %1266 = vmatpush.bf16.msra.mxu0 %v1257
        %1267 = vmatpush.bf16.msra.mxu0 %v1256
        %1268 = vmatmul.bf16.gmra.mxu0 %v582
        %v1269 = vpop.f32.mrf.mxu0
        %v1270 = vadd.f32 %v1247, %v1269
        %v1271 = vpop.f32.mrf.mxu0
        %v1272 = vadd.f32 %v1247, %v1271
        %1273 = vdwg.mxu0
        %s1274 = scalar_lea.vmem %s512, 48
        %v1275 = vld [vmem:[%s1274] sm:$0xf]
        %v1276 = vld [vmem:[%s1274 + $0x4] sm:$0xf]
        %v1277 = vld [vmem:[%s1274 + $0x8] sm:$0xf]
        %v1278 = vld [vmem:[%s1274 + $0xc] sm:$0xf]
        %v1279 = vperm.slane %v560, 7
        %v1284 = vunpack.c.l.b16 %v1275
        %v1285 = vunpack.c.l.b16 %v1276
        %v1286 = vunpack.c.l.b16 %v1277
        %v1287 = vunpack.c.l.b16 %v1278
        %v1288 = vpack.c.b16 %v1285, %v1284
        %v1289 = vpack.c.b16 %v1287, %v1286
        %1292 = vmatpush.bf16.msra.mxu0 0
        %1293 = vmatpush.bf16.msra.mxu0 0
        %1294 = vmatpush.bf16.msra.mxu0 0
        %1295 = vmatpush.bf16.msra.mxu0 0
        %1296 = vmatpush.bf16.msra.mxu0 0
        %1297 = vmatpush.bf16.msra.mxu0 0
        %1298 = vmatpush.bf16.msra.mxu0 %v1289
        %1299 = vmatpush.bf16.msra.mxu0 %v1288
        %1300 = vmatmul.bf16.gmra.mxu0 %v582
        %v1301 = vpop.f32.mrf.mxu0
        %v1302 = vadd.f32 %v1279, %v1301
        %v1303 = vpop.f32.mrf.mxu0
        %v1304 = vadd.f32 %v1279, %v1303
        %1305 = vdwg.mxu0
        %s1306 = scalar_lea.vmem %s517, 48
        %v1307 = vld [vmem:[%s1306] sm:$0xf]
        %v1308 = vld [vmem:[%s1306 + $0x4] sm:$0xf]
        %v1309 = vld [vmem:[%s1306 + $0x8] sm:$0xf]
        %v1310 = vld [vmem:[%s1306 + $0xc] sm:$0xf]
        %v1311 = vperm.slane %v561, 3
        %v1316 = vunpack.c.l.b16 %v1307
        %v1317 = vunpack.c.l.b16 %v1308
        %v1318 = vunpack.c.l.b16 %v1309
        %v1319 = vunpack.c.l.b16 %v1310
        %v1320 = vpack.c.b16 %v1317, %v1316
        %v1321 = vpack.c.b16 %v1319, %v1318
        %1324 = vmatpush.bf16.msra.mxu0 0
        %1325 = vmatpush.bf16.msra.mxu0 0
        %1326 = vmatpush.bf16.msra.mxu0 0
        %1327 = vmatpush.bf16.msra.mxu0 0
        %1328 = vmatpush.bf16.msra.mxu0 0
        %1329 = vmatpush.bf16.msra.mxu0 0
        %1330 = vmatpush.bf16.msra.mxu0 %v1321
        %1331 = vmatpush.bf16.msra.mxu0 %v1320
        %1332 = vmatmul.bf16.gmra.mxu0 %v582
        %v1333 = vpop.f32.mrf.mxu0
        %v1334 = vadd.f32 %v1311, %v1333
        %v1335 = vpop.f32.mrf.mxu0
        %v1336 = vadd.f32 %v1311, %v1335
        %1337 = vdwg.mxu0
        %v1338 = vpack.c.bf16 %v1270, %v1270
        %v1339 = vpack.c.bf16 %v1302, %v1302
        %v1340 = vpack.c.bf16 %v1334, %v1334
        %v1342 = vsel %vm663, %v1338, 0
        %v1345 = vsel %vm663, %v1339, 0
        %1347 = vmatpush.bf16.xpose.msra.mxu0 0
        %1348 = vmatpush.bf16.xpose.msra.mxu0 0
        %1349 = vmatpush.bf16.xpose.msra.mxu0 0
        %1350 = vmatpush.bf16.xpose.msra.mxu0 0
        %1351 = vmatpush.bf16.xpose.msra.mxu0 0
        %1352 = vmatpush.bf16.xpose.msra.mxu0 0
        %1353 = vmatpush.bf16.xpose.msra.mxu0 0
        %1354 = vmatpush.bf16.xpose.msra.mxu0 %v1345
        %1355 = vmatmul.bf16.gmra.mxu0 %v1342
        %v1356 = vpop.f32.mrf.mxu0
        %v1357 = vadd.f32 0.0, %v1356
        %v1358 = vpop.f32.mrf.mxu0
        %1359 = vdwg.mxu0
        %v1360 = vsel %vm663, %v1357, -inf
        %1361 = vmax.xlane.f32.xlu0 %v1360
        %v1362 = vpop.xlane.xlu0 %1361
        %v1363 = vsub.f32 %v1357, %v1362
        %v1364 = vmul.f32 %v1363, 1.442695
        %v1365 = vpow.pop %v1364
        %v1366 = vsel %vm663, %v1365, 0.0
        %1367 = vadd.xlane.f32.xlu0 %v1366
        %v1368 = vpop.xlane.xlu0 %1367
        %v1369 = vrcp.pop %v1368
        %v1370 = vmul.f32 %v1365, %v1369
        %v1371 = vpack.c.bf16 %v1370, %v1370
        %v1373 = vsel %vm663, %v1371, 0
        %v1376 = vsel %vm698, %v1340, 0
        %1378 = vmatpush.bf16.msra.mxu0 0
        %1379 = vmatpush.bf16.msra.mxu0 0
        %1380 = vmatpush.bf16.msra.mxu0 0
        %1381 = vmatpush.bf16.msra.mxu0 0
        %1382 = vmatpush.bf16.msra.mxu0 0
        %1383 = vmatpush.bf16.msra.mxu0 0
        %1384 = vmatpush.bf16.msra.mxu0 0
        %1385 = vmatpush.bf16.msra.mxu0 %v1376
        %1386 = vmatmul.bf16.gmra.mxu0 %v1373
        %v1387 = vpop.f32.mrf.mxu0
        %v1388 = vadd.f32 0.0, %v1387
        %v1389 = vpop.f32.mrf.mxu0
        %1390 = vdwg.mxu0
        %v1391 = vpack.c.bf16 %v1272, %v1272
        %v1392 = vpack.c.bf16 %v1304, %v1304
        %v1393 = vpack.c.bf16 %v1336, %v1336
        %v1395 = vsel %vm663, %v1391, 0
        %v1398 = vsel %vm663, %v1392, 0
        %1400 = vmatpush.bf16.xpose.msra.mxu0 0
        %1401 = vmatpush.bf16.xpose.msra.mxu0 0
        %1402 = vmatpush.bf16.xpose.msra.mxu0 0
        %1403 = vmatpush.bf16.xpose.msra.mxu0 0
        %1404 = vmatpush.bf16.xpose.msra.mxu0 0
        %1405 = vmatpush.bf16.xpose.msra.mxu0 0
        %1406 = vmatpush.bf16.xpose.msra.mxu0 0
        %1407 = vmatpush.bf16.xpose.msra.mxu0 %v1398
        %1408 = vmatmul.bf16.gmra.mxu0 %v1395
        %v1409 = vpop.f32.mrf.mxu0
        %v1410 = vadd.f32 0.0, %v1409
        %v1411 = vpop.f32.mrf.mxu0
        %1412 = vdwg.mxu0
        %v1413 = vsel %vm663, %v1410, -inf
        %1414 = vmax.xlane.f32.xlu0 %v1413
        %v1415 = vpop.xlane.xlu0 %1414
        %v1416 = vsub.f32 %v1410, %v1415
        %v1417 = vmul.f32 %v1416, 1.442695
        %v1418 = vpow.pop %v1417
        %v1419 = vsel %vm663, %v1418, 0.0
        %1420 = vadd.xlane.f32.xlu0 %v1419
        %v1421 = vpop.xlane.xlu0 %1420
        %v1422 = vrcp.pop %v1421
        %v1423 = vmul.f32 %v1418, %v1422
        %v1424 = vpack.c.bf16 %v1423, %v1423
        %v1426 = vsel %vm663, %v1424, 0
        %v1429 = vsel %vm698, %v1393, 0
        %1431 = vmatpush.bf16.msra.mxu0 0
        %1432 = vmatpush.bf16.msra.mxu0 0
        %1433 = vmatpush.bf16.msra.mxu0 0
        %1434 = vmatpush.bf16.msra.mxu0 0
        %1435 = vmatpush.bf16.msra.mxu0 0
        %1436 = vmatpush.bf16.msra.mxu0 0
        %1437 = vmatpush.bf16.msra.mxu0 0
        %1438 = vmatpush.bf16.msra.mxu0 %v1429
        %1439 = vmatmul.bf16.gmra.mxu0 %v1426
        %v1440 = vpop.f32.mrf.mxu0
        %v1441 = vadd.f32 0.0, %v1440
        %v1442 = vpop.f32.mrf.mxu0
        %1443 = vdwg.mxu0
        %v1444 = vpack.c.bf16 %v1441, %v1388
        %s1445 = scalar_lea.vmem %s522, 12
        %v1446 = vld [vmem:[%s1445] sm:$0xf]
        %v1448 = vsel %vm663, %v1444, 0
        %v1451 = vsel %vm698, %v1446, 0
        %1453 = vmatpush.bf16.msra.mxu0 0
        %1454 = vmatpush.bf16.msra.mxu0 0
        %1455 = vmatpush.bf16.msra.mxu0 0
        %1456 = vmatpush.bf16.msra.mxu0 0
        %1457 = vmatpush.bf16.msra.mxu0 0
        %1458 = vmatpush.bf16.msra.mxu0 0
        %1459 = vmatpush.bf16.msra.mxu0 0
        %1460 = vmatpush.bf16.msra.mxu0 %v1451
        %1461 = vmatmul.bf16.gmra.mxu0 %v1448
        %v1462 = vpop.f32.mrf.mxu0
        %v1463 = vadd.f32 0.0, %v1462
        %v1464 = vpop.f32.mrf.mxu0
        %v1465 = vadd.f32 0.0, %v1464
        %1466 = vdwg.mxu0
        %v1467 = vadd.f32 %v1240, %v1463
        %v1468 = vadd.f32 %v1241, %v1465
        %v1469 = vadd.f32 %v556, %v1467
        %v1470 = vadd.f32 %v557, %v1468
        %v1471 = vperm.slane %v558, 0
        %v1472 = vadd.f32 %v1469, %v1471
        %v1473 = vadd.f32 %v1470, %v1471
        %v1474 = vsel %vm580, %v1472, 0.0
        %1475 = vadd.xlane.f32.xlu0 %v1474
        %v1476 = vpop.xlane.xlu0 %1475
        %v1477 = vsel %vm580, %v1473, 0.0
        %1478 = vadd.xlane.f32.xlu0 %v1477
        %v1479 = vpop.xlane.xlu0 %1478
        %v1480 = vrcp.pop 32.0
        %v1481 = vmul.f32 32.0, %v1480
        %v1482 = vsub.f32 1.0, %v1481
        %v1483 = vmul.f32 %v1480, %v1482
        %v1484 = vadd.f32 %v1480, %v1483
        %vm1485 = vweird.f32 %v1480
        %v1486 = vsel %vm1485, %v1480, %v1484
        %v1487 = vmul.f32 %v1476, %v1486
        %v1488 = vmul.f32 %v1479, %v1486
        %v1489 = vsub.f32 %v1472, %v1487
        %v1490 = vsub.f32 %v1473, %v1488
        %v1491 = vmul.f32 %v1489, %v1489
        %v1492 = vmul.f32 %v1490, %v1490
        %v1493 = vsel %vm580, %v1491, 0.0
        %1494 = vadd.xlane.f32.xlu0 %v1493
        %v1495 = vpop.xlane.xlu0 %1494
        %v1496 = vsel %vm580, %v1492, 0.0
        %1497 = vadd.xlane.f32.xlu0 %v1496
        %v1498 = vpop.xlane.xlu0 %1497
        %v1499 = vmul.f32 %v1495, %v1486
        %v1500 = vmul.f32 %v1498, %v1486
        %v1501 = vadd.f32 %v1499, 1e-05
        %v1502 = vadd.f32 %v1500, 1e-05
        %v1503 = vrsqrt.pop %v1501
        %v1504 = vmul.f32 %v1503, %v1501
        %v1505 = vmul.f32 %v1504, %v1503
        %v1506 = vmul.f32 0.5, %v1505
        %v1507 = vsub.f32 1.5, %v1506
        %v1508 = vmul.f32 %v1503, %v1507
        %vm1509 = vweird.f32 %v1501
        %vm1510 = vweird.f32 %v1503
        %vm1511 = vmor %vm1509, %vm1510
        %v1512 = vsel %vm1511, %v1503, %v1508
        %v1513 = vrsqrt.pop %v1502
        %v1514 = vmul.f32 %v1513, %v1502
        %v1515 = vmul.f32 %v1514, %v1513
        %v1516 = vmul.f32 0.5, %v1515
        %v1517 = vsub.f32 1.5, %v1516
        %v1518 = vmul.f32 %v1513, %v1517
        %vm1519 = vweird.f32 %v1502
        %vm1520 = vweird.f32 %v1513
        %vm1521 = vmor %vm1519, %vm1520
        %v1522 = vsel %vm1521, %v1513, %v1518
        %v1523 = vmul.f32 %v1489, %v1512
        %v1524 = vmul.f32 %v1490, %v1522
        %v1525 = vperm.slane %v558, 1
        %v1526 = vmul.f32 %v1523, %v1525
        %v1527 = vmul.f32 %v1524, %v1525
        %v1528 = vperm.slane %v558, 2
        %v1529 = vadd.f32 %v1526, %v1528
        %v1530 = vadd.f32 %v1527, %v1528
        %v1531 = vpack.c.bf16 %v1530, %v1529
        %v1532 = vld [vmem:[%s527] sm:$0xf]
        %v1533 = vld [vmem:[%s527 + $0x4] sm:$0xf]
        %v1534 = vld [vmem:[%s527 + $0x8] sm:$0xf]
        %v1535 = vld [vmem:[%s527 + $0xc] sm:$0xf]
        %v1537 = vperm.slane %v559, 0
        %v1543 = vunpack.c.l.b16 %v1532
        %v1544 = vunpack.c.l.b16 %v1533
        %v1545 = vunpack.c.l.b16 %v1534
        %v1546 = vunpack.c.l.b16 %v1535
        %v1547 = vpack.c.b16 %v1544, %v1543
        %v1548 = vpack.c.b16 %v1546, %v1545
        %v1552 = vsel %vm580, %v1531, 0
        %1554 = vmatpush.bf16.msra.mxu0 0
        %1555 = vmatpush.bf16.msra.mxu0 0
        %1556 = vmatpush.bf16.msra.mxu0 0
        %1557 = vmatpush.bf16.msra.mxu0 0
        %1558 = vmatpush.bf16.msra.mxu0 0
        %1559 = vmatpush.bf16.msra.mxu0 0
        %1560 = vmatpush.bf16.msra.mxu0 %v1548
        %1561 = vmatpush.bf16.msra.mxu0 %v1547
        %1562 = vmatmul.bf16.gmra.mxu0 %v1552
        %v1563 = vpop.f32.mrf.mxu0
        %v1564 = vadd.f32 %v1537, %v1563
        %v1565 = vpop.f32.mrf.mxu0
        %v1566 = vadd.f32 %v1537, %v1565
        %1567 = vdwg.mxu0
        %v1568 = vmax.f32 %v1564, 0.0
        %v1569 = vmax.f32 %v1566, 0.0
        %v1570 = vpack.c.bf16 %v1569, %v1568
        %v1571 = vld [vmem:[%s532] sm:$0xf]
        %v1572 = vld [vmem:[%s532 + $0x4] sm:$0xf]
        %v1573 = vld [vmem:[%s532 + $0x8] sm:$0xf]
        %v1574 = vld [vmem:[%s532 + $0xc] sm:$0xf]
        %v1575 = vld [vmem:[%s532 + $0x10] sm:$0xf]
        %v1576 = vld [vmem:[%s532 + $0x14] sm:$0xf]
        %v1577 = vld [vmem:[%s532 + $0x18] sm:$0xf]
        %v1578 = vld [vmem:[%s532 + $0x1c] sm:$0xf]
        %v1579 = vperm.slane %v558, 3
        %v1588 = vunpack.c.l.b16 %v1571
        %v1589 = vunpack.c.l.b16 %v1572
        %v1590 = vunpack.c.l.b16 %v1573
        %v1591 = vunpack.c.l.b16 %v1574
        %v1592 = vunpack.c.l.b16 %v1575
        %v1593 = vunpack.c.l.b16 %v1576
        %v1594 = vunpack.c.l.b16 %v1577
        %v1595 = vunpack.c.l.b16 %v1578
        %v1596 = vpack.c.b16 %v1589, %v1588
        %v1597 = vpack.c.b16 %v1591, %v1590
        %v1598 = vpack.c.b16 %v1593, %v1592
        %v1599 = vpack.c.b16 %v1595, %v1594
        %vm1604 = vcmask 523264
        %v1606 = vsel %vm1604, %v1570, 0
        %1608 = vmatpush.bf16.msra.mxu0 0
        %1609 = vmatpush.bf16.msra.mxu0 0
        %1610 = vmatpush.bf16.msra.mxu0 0
        %1611 = vmatpush.bf16.msra.mxu0 0
        %1612 = vmatpush.bf16.msra.mxu0 %v1599
        %1613 = vmatpush.bf16.msra.mxu0 %v1598
        %1614 = vmatpush.bf16.msra.mxu0 %v1597
        %1615 = vmatpush.bf16.msra.mxu0 %v1596
        %1616 = vmatmul.bf16.gmra.mxu0 %v1606
        %v1617 = vpop.f32.mrf.mxu0
        %v1618 = vadd.f32 %v1579, %v1617
        %v1619 = vpop.f32.mrf.mxu0
        %v1620 = vadd.f32 %v1579, %v1619
        %1621 = vdwg.mxu0
        %v1622 = vadd.f32 %v1529, %v1618
        %v1623 = vadd.f32 %v1530, %v1620
        %v1624 = vsel %vm580, %v1622, 0.0
        %1625 = vadd.xlane.f32.xlu0 %v1624
        %v1626 = vpop.xlane.xlu0 %1625
        %v1627 = vsel %vm580, %v1623, 0.0
        %1628 = vadd.xlane.f32.xlu0 %v1627
        %v1629 = vpop.xlane.xlu0 %1628
        %v1630 = vmul.f32 %v1626, %v1486
        %v1631 = vmul.f32 %v1629, %v1486
        %v1632 = vsub.f32 %v1622, %v1630
        %v1633 = vsub.f32 %v1623, %v1631
        %v1634 = vmul.f32 %v1632, %v1632
        %v1635 = vmul.f32 %v1633, %v1633
        %v1636 = vsel %vm580, %v1634, 0.0
        %1637 = vadd.xlane.f32.xlu0 %v1636
        %v1638 = vpop.xlane.xlu0 %1637
        %v1639 = vsel %vm580, %v1635, 0.0
        %1640 = vadd.xlane.f32.xlu0 %v1639
        %v1641 = vpop.xlane.xlu0 %1640
        %v1642 = vmul.f32 %v1638, %v1486
        %v1643 = vmul.f32 %v1641, %v1486
        %v1644 = vadd.f32 %v1642, 1e-05
        %v1645 = vadd.f32 %v1643, 1e-05
        %v1646 = vrsqrt.pop %v1644
        %v1647 = vmul.f32 %v1646, %v1644
        %v1648 = vmul.f32 %v1647, %v1646
        %v1649 = vmul.f32 0.5, %v1648
        %v1650 = vsub.f32 1.5, %v1649
        %v1651 = vmul.f32 %v1646, %v1650
        %vm1652 = vweird.f32 %v1644
        %vm1653 = vweird.f32 %v1646
        %vm1654 = vmor %vm1652, %vm1653
        %v1655 = vsel %vm1654, %v1646, %v1651
        %v1656 = vrsqrt.pop %v1645
        %v1657 = vmul.f32 %v1656, %v1645
        %v1658 = vmul.f32 %v1657, %v1656
        %v1659 = vmul.f32 0.5, %v1658
        %v1660 = vsub.f32 1.5, %v1659
        %v1661 = vmul.f32 %v1656, %v1660
        %vm1662 = vweird.f32 %v1645
        %vm1663 = vweird.f32 %v1656
        %vm1664 = vmor %vm1662, %vm1663
        %v1665 = vsel %vm1664, %v1656, %v1661
        %v1666 = vmul.f32 %v1632, %v1655
        %v1667 = vmul.f32 %v1633, %v1665
        %v1668 = vperm.slane %v558, 4
        %v1669 = vmul.f32 %v1666, %v1668
        %v1670 = vmul.f32 %v1667, %v1668
        %v1671 = vperm.slane %v558, 5
        %v1672 = vadd.f32 %v1669, %v1671
        %v1673 = vadd.f32 %v1670, %v1671
        %1674 = vst.msk [vmem:[#allocation2] sm:$0xff] %vm580, %v1672
        %1675 = vst.msk [vmem:[#allocation2 + $0x8] sm:$0xff] %vm580, %v1673
        %1676 = vst.msk [vmem:[%s496] sm:$0xff] %vm580, %v1672
        %1677 = vst.msk [vmem:[%s496 + $0x8] sm:$0xff] %vm580, %v1673
        %s1678 = sand.u32 %s306, 1
        %s1679 = scalar_lea.sflag [#allocation4], %s1678
        %s1680 = sand.u32 %s306, 1
        %s1681 = smul.addr %s1680, 16
        %s1682 = scalar_lea.vmem [#allocation3], %s1681
        // Predicated region
        $region65: #{tpu_custom_call.1} parent=59 // pred_check
          %p1683 = pneg %p316
        $region66: #{tpu_custom_call.1} parent=59 // pred_check_branch
          %1685 = sbr.rel (%p1683) target = $region68
        $region67: #{tpu_custom_call.1} parent=59 // pred_region
          %s1686 = smul.u32 2, %s28
          %1688 = vsyncadd %s1679, 0
          %s1689 = smul.addr %s29, 4
          %s1690 = sadd.s32 %s1686, %s1689
          %s1691 = smul.addr %s1690, 8
          %s1692 = scalar_lea.hbm %s10, %s1691
          %s1693 = sshll.u32 %s1682, 4
          %s1694 = int_to_ptr.vmem [resolvable:$true] %s1693
          %s1695 = sshll.u32 %s1692, 4
          %s1696 = int_to_ptr.hbm [resolvable:$true] %s1695
          %1701 = dma.vmem_to_hbm [thread:$0]  %s1694, 256, %s1696, %s1679, 128, 128, 8
        $region68: #{tpu_custom_call.1} parent=59 // pred_fallthru
          _
      $region60: #{tpu_custom_call.1} parent=5 // pred_fallthru
        _
      %p1702 = scmp.le.s32.totalorder 2, %s19
      // Predicated region
      $region69: #{tpu_custom_call.1} parent=5 // pred_check
        %p1703 = pneg %p1702
      $region70: #{tpu_custom_call.1} parent=5 // pred_check_branch
        %1705 = sbr.rel (%p1703) target = $region72
      $region71: #{tpu_custom_call.1} parent=5 // pred_region
        %s1706 = ssub.s32 %s19, 2
        // Predicated region
        $region73: #{tpu_custom_call.1} parent=71 // pred_check
          %p1707 = pneg %p322
        $region74: #{tpu_custom_call.1} parent=71 // pred_check_branch
          %1709 = sbr.rel (%p1707) target = $region76
        $region75: #{tpu_custom_call.1} parent=71 // pred_region
          %s1710 = sand.u32 %s307, 1
          %s1711 = scalar_lea.sflag [#allocation4], %s1710
          %s1712 = sand.u32 %s307, 1
          %s1713 = smul.addr %s1712, 16
          %s1714 = scalar_lea.vmem [#allocation3], %s1713
          %1716 = dma.done %s1711, 256
        $region76: #{tpu_custom_call.1} parent=71 // pred_fallthru
          _
      $region72: #{tpu_custom_call.1} parent=5 // pred_fallthru
        _
    $region6: #{tpu_custom_call.1} parent=1 // loop_footer
      %s23 = sadd.s32 1, %s19
    $region7: #{tpu_custom_call.1} parent=1 // loop_footer_branch
      %18 = sbr.rel target = $region3
    $region8: #{tpu_custom_call.1} parent=1 // loop_exit
      _
    %1717 = vsyncpa [#allocation4], 1
    %s1718 = scalar_lea.sflag [#allocation4], 1
    %1719 = vsyncpa %s1718, 1

</llo_original>
